<compile_context>
chip_gen: v7x
topology: tpu7x:2x2x1
jax: 0.10.0
libtpu: 0.0.40
codegen_flags: <defaults>
</compile_context>

<pallas_src>
import jax
import jax.numpy as jnp
from jax.experimental import pallas as pl
from jax.experimental.pallas import tpu as pltpu


def _scaled_conv1x1_kernel(w_ref, s_ref, x_ref, o_ref):
    # w_ref: (TCO, Cin)     raw conv weight tile (constant block index over n)
    # s_ref: (1, 1, Cin)    per-sample channel scale
    # x_ref: (1, Cin, HW)   full channel x spatial slab for sample n
    # o_ref: (1, TCO, HW)   lane-dense output (HW on the 128-lane axis)
    w_scaled = w_ref[...] * s_ref[0]          # (TCO, Cin); cheap VPU filler in an HBM-bound kernel
    o_ref[0] = jnp.dot(
        w_scaled, x_ref[0], preferred_element_type=jnp.float32
    ).astype(o_ref.dtype)


def _tensorcores_per_chip() -> int:
    # Conservative core-count probe: only v7x-class chips have 2 TensorCores.
    # Any uncertainty falls back to 1, which is always correct (just no split).
    try:
        kind = (jax.devices()[0].device_kind or "").lower()
    except Exception:
        return 1
    return 2 if "v7" in kind else 1


def mul_conv2d_1x1(x_nchw, scale_nc11, weight_oi11):
    """Computes conv2d_1x1(x * scale), bias-free, NCHW in / NCHW out."""
    N, Cin, H, W = x_nchw.shape
    Cout = weight_oi11.shape[0]
    HW = H * W

    w_mat = weight_oi11.reshape(Cout, Cin)      # (Cout, Cin), passed raw (no per-sample copy)
    s_mat = scale_nc11.reshape(N, 1, Cin)       # (N, 1, Cin)
    x_flat = x_nchw.reshape(N, Cin, HW)         # free reshape, no transpose / HBM round trip

    # Split Cout across the two v7x TensorCores only when the batch axis can't
    # provide the parallelism (N == 1); single-core chips never split.
    multicore = _tensorcores_per_chip() > 1
    cb = 2 if (multicore and N == 1 and Cout % 16 == 0 and Cout >= 16) else 1
    tco = Cout // cb
    # TODO(synk): for large N, block several samples per grid step (Nb, Cin, HW)
    # to amortize the ~0.35 us/step pipeline overhead.

    out_flat = pl.pallas_call(
        _scaled_conv1x1_kernel,
        out_shape=jax.ShapeDtypeStruct((N, Cout, HW), x_nchw.dtype),
        grid_spec=pltpu.PrefetchScalarGridSpec(
            num_scalar_prefetch=0,
            grid=(cb, N),                        # split axis leads (core-split axis)
            in_specs=[
                # Weight: block index constant in n -> DMA'd once per Cout half.
                pl.BlockSpec((tco, Cin), lambda j, n: (j, 0)),
                # Per-sample scale (tiny), indexed by n only.
                pl.BlockSpec((1, 1, Cin), lambda j, n: (n, 0, 0)),
                # Activations: full (Cin, HW) slab for sample n.
                pl.BlockSpec((1, Cin, HW), lambda j, n: (n, 0, 0)),
            ],
            out_specs=pl.BlockSpec((1, tco, HW), lambda j, n: (n, j, 0)),
        ),
        compiler_params=pltpu.CompilerParams(
            dimension_semantics=("parallel", "parallel"),
        ),
    )(w_mat, s_mat, x_flat)

    # (N, Cout, H*W) -> NCHW is again a free reshape.
    return out_flat.reshape(N, Cout, H, W)


if __name__ == "__main__":
    key = jax.random.PRNGKey(0)
    k_x, k_s, k_w = jax.random.split(key, 3)

    # Shapes implied by the PyTorch module's example tensors.
    N, Cin, H, W, Cout = 1, 480, 28, 28, 80

    x238 = jax.random.normal(k_x, (N, Cin, H, W), dtype=jnp.float32)
    x243 = jax.random.normal(k_s, (N, Cin, 1, 1), dtype=jnp.float32)

    # Conv2d(480, 80, kernel_size=1, bias=False) weight, kaiming-uniform-like.
    fan_in = Cin * 1 * 1
    bound = (1.0 / fan_in) ** 0.5
    conv_w = jax.random.uniform(
        k_w, (Cout, Cin, 1, 1), minval=-bound, maxval=bound, dtype=jnp.float32
    )

    out = mul_conv2d_1x1(x238, x243, conv_w)
    out = jax.block_until_ready(out)

    # Reference in plain JAX: elementwise mul then 1x1 conv as a matmul.
    ref = jnp.einsum("nchw,oc->nohw", x238 * x243, conv_w.reshape(Cout, Cin))
    assert out.shape == (N, Cout, H, W), out.shape
    # Scale is folded into the weight (reassociated multiply) -> loosened fp32 tol.
    assert jnp.allclose(out, ref, atol=1e-3, rtol=1e-3)

    print("KERNEL_OK")
</pallas_src>

<mosaic_0001>
module attributes {stable_mosaic.version = 11 : i64} {
  func.func @_scaled_conv1x1_kernel(%arg0: i32, %arg1: i32, %arg2: memref<80x480xf32, #tpu.memory_space<vmem>>, %arg3: memref<1x1x480xf32, #tpu.memory_space<vmem>>, %arg4: memref<1x480x784xf32, #tpu.memory_space<vmem>>, %arg5: memref<1x80x784xf32, #tpu.memory_space<vmem>>) attributes {dimension_semantics = [#tpu.dimension_semantics<parallel>, #tpu.dimension_semantics<parallel>], iteration_bounds = array<i64: 1, 1>, scalar_prefetch = 0 : i64, scratch_operands = 0 : i64, tpu.core_type = #tpu.core_type<tc>, window_params = [{transform_indices = @transform_0, window_bounds = array<i64: 80, 480>}, {transform_indices = @transform_1, window_bounds = array<i64: 1, 1, 480>}, {transform_indices = @transform_2, window_bounds = array<i64: 1, 480, 784>}, {transform_indices = @transform_3, window_bounds = array<i64: 1, 80, 784>}]} {
    %c0 = arith.constant 0 : index
    %c0_0 = arith.constant 0 : index
    %0 = vector.load %arg2[%c0, %c0_0] : memref<80x480xf32, #tpu.memory_space<vmem>>, vector<80x480xf32>
    %c0_1 = arith.constant 0 : index
    %c0_2 = arith.constant 0 : index
    %c0_3 = arith.constant 0 : index
    %1 = vector.load %arg3[%c0_1, %c0_2, %c0_3] : memref<1x1x480xf32, #tpu.memory_space<vmem>>, vector<1x1x480xf32>
    %2 = vector.shape_cast %1 : vector<1x1x480xf32> to vector<1x480xf32>
    %3 = vector.broadcast %2 : vector<1x480xf32> to vector<80x480xf32>
    %4 = arith.mulf %0, %3 : vector<80x480xf32>
    %c0_4 = arith.constant 0 : index
    %c0_5 = arith.constant 0 : index
    %c0_6 = arith.constant 0 : index
    %5 = vector.load %arg4[%c0_4, %c0_5, %c0_6] : memref<1x480x784xf32, #tpu.memory_space<vmem>>, vector<1x480x784xf32>
    %6 = vector.shape_cast %5 : vector<1x480x784xf32> to vector<480x784xf32>
    %cst = arith.constant dense<0.000000e+00> : vector<80x784xf32>
    %7 = tpu.matmul %4, %6, %cst {dimension_numbers = #tpu.dot_dimension_numbers<[1], [0], [0], [1], [0, 0, 1, 1], [], []>} : vector<80x480xf32>, vector<480x784xf32>, vector<80x784xf32> -> vector<80x784xf32>
    %c0_7 = arith.constant 0 : index
    %c0_8 = arith.constant 0 : index
    %c0_9 = arith.constant 0 : index
    %8 = vector.load %arg5[%c0_7, %c0_8, %c0_9] : memref<1x80x784xf32, #tpu.memory_space<vmem>>, vector<1x80x784xf32>
    %9 = vector.shape_cast %8 : vector<1x80x784xf32> to vector<80x784xf32>
    %10 = vector.shape_cast %7 : vector<80x784xf32> to vector<1x80x784xf32>
    tpu.vector_store %arg5[%c0_7, %c0_8, %c0_9], %10 {strides = array<i32>} : memref<1x80x784xf32, #tpu.memory_space<vmem>>, vector<1x80x784xf32>,
    return
  }
  func.func @transform_0(%arg0: i32, %arg1: i32) -> (i32, i32) {
    %c0_i32 = arith.constant 0 : i32
    %c0_i32_0 = arith.constant 0 : i32
    return %arg0, %c0_i32 : i32, i32
  }
  func.func @transform_1(%arg0: i32, %arg1: i32) -> (i32, i32, i32) {
    %c0_i32 = arith.constant 0 : i32
    %c0_i32_0 = arith.constant 0 : i32
    %c0_i32_1 = arith.constant 0 : i32
    return %arg1, %c0_i32, %c0_i32_0 : i32, i32, i32
  }
  func.func @transform_2(%arg0: i32, %arg1: i32) -> (i32, i32, i32) {
    %c0_i32 = arith.constant 0 : i32
    %c0_i32_0 = arith.constant 0 : i32
    %c0_i32_1 = arith.constant 0 : i32
    return %arg1, %c0_i32, %c0_i32_0 : i32, i32, i32
  }
  func.func @transform_3(%arg0: i32, %arg1: i32) -> (i32, i32, i32) {
    %c0_i32 = arith.constant 0 : i32
    %c0_i32_0 = arith.constant 0 : i32
    return %arg1, %arg0, %c0_i32 : i32, i32, i32
  }
}

</mosaic_0001>

<llo_original>
// kernel: tpu_custom_call.1
$region0: #{tpu_custom_call.1}
  #allocation0 [shape = 'u32[]', space=smem, size = 0x4, offset = 0x4, fixed_abs, tag = 'smem constant byte address 0x4 - core index']
  #allocation1 [shape = 'u32[144,128]{1,0:T(1,128)}', space=vmem, size = 0x12000, scoped, tag = 'internal scratch']
  %s0 = inlined_call_operand.vmem [shape: f32[80,480], index: 0, kind: input, shape index: {}]
  %s1 = inlined_call_operand.vmem [shape: f32[1,1,480], index: 1, kind: input, shape index: {}]
  %s2 = inlined_call_operand.vmem [shape: f32[1,480,784], index: 2, kind: input, shape index: {}]
  %s3 = inlined_call_operand.hbm [shape: f32[1,80,784], index: 3, kind: output, shape index: {}]
  %s4 = sld [smem:[#allocation0]]
  $region22: #{tpu_custom_call.1} parent=0
    _
  %s6 = ssub.s32 1, %s4
  %s7 = scalar_select 0, %s6, %s4
  $region1: #{tpu_custom_call.1} parent=0
    #allocation2 [shape = 'u8[286720]{0}', space=vmem, size = 0x46000, scoped, tag = 'output window, operand 0, single buffered']
    #allocation3 [shape = 's32[1]{0}', space=sflag, size = 0x4, scoped, tag = 'scoped memory for tpu_custom_call.1']
    %8 = vsyncpa [#allocation3], 0
    // Predicated region
    $region2: #{tpu_custom_call.1} parent=1 // pred_check
      _
    $region3: #{tpu_custom_call.1} parent=1 // pred_check_branch
      %10 = sbr.rel (0) target = $region5
    $region4: #{tpu_custom_call.1} parent=1 // pred_region
      _
    $region5: #{tpu_custom_call.1} parent=1 // pred_fallthru
      _
    // Predicated region
    $region6: #{tpu_custom_call.1} parent=1 // pred_check
      _
    $region7: #{tpu_custom_call.1} parent=1 // pred_check_branch
      %12 = sbr.rel (0) target = $region9
    $region8: #{tpu_custom_call.1} parent=1 // pred_region
      _
    $region9: #{tpu_custom_call.1} parent=1 // pred_fallthru
      _
    // Predicated region
    $region10: #{tpu_custom_call.1} parent=1 // pred_check
      _
    $region11: #{tpu_custom_call.1} parent=1 // pred_check_branch
      %14 = sbr.rel (0) target = $region13
    $region12: #{tpu_custom_call.1} parent=1 // pred_region
      _
    $region13: #{tpu_custom_call.1} parent=1 // pred_fallthru
      _
    %v15 = vld [vmem:[%s0] sm:$0xff]
    %v16 = vld [vmem:[%s0 + $0x8] sm:$0xff]
    %v17 = vld [vmem:[%s0 + $0x10] sm:$0xff]
    %v18 = vld [vmem:[%s0 + $0x18] sm:$0xff]
    %v19 = vld [vmem:[%s0 + $0x20] sm:$0xff]
    %v20 = vld [vmem:[%s0 + $0x28] sm:$0xff]
    %v21 = vld [vmem:[%s0 + $0x30] sm:$0xff]
    %v22 = vld [vmem:[%s0 + $0x38] sm:$0xff]
    %v23 = vld [vmem:[%s0 + $0x40] sm:$0xff]
    %v24 = vld [vmem:[%s0 + $0x48] sm:$0xff]
    %v25 = vld [vmem:[%s0 + $0x50] sm:$0xff]
    %v26 = vld [vmem:[%s0 + $0x58] sm:$0xff]
    %v27 = vld [vmem:[%s0 + $0x60] sm:$0xff]
    %v28 = vld [vmem:[%s0 + $0x68] sm:$0xff]
    %v29 = vld [vmem:[%s0 + $0x70] sm:$0xff]
    %v30 = vld [vmem:[%s0 + $0x78] sm:$0xff]
    %v31 = vld [vmem:[%s0 + $0x80] sm:$0xff]
    %v32 = vld [vmem:[%s0 + $0x88] sm:$0xff]
    %v33 = vld [vmem:[%s0 + $0x90] sm:$0xff]
    %v34 = vld [vmem:[%s0 + $0x98] sm:$0xff]
    %v35 = vld [vmem:[%s0 + $0xa0] sm:$0xff]
    %v36 = vld [vmem:[%s0 + $0xa8] sm:$0xff]
    %v37 = vld [vmem:[%s0 + $0xb0] sm:$0xff]
    %v38 = vld [vmem:[%s0 + $0xb8] sm:$0xff]
    %v39 = vld [vmem:[%s0 + $0xc0] sm:$0xff]
    %v40 = vld [vmem:[%s0 + $0xc8] sm:$0xff]
    %v41 = vld [vmem:[%s0 + $0xd0] sm:$0xff]
    %v42 = vld [vmem:[%s0 + $0xd8] sm:$0xff]
    %v43 = vld [vmem:[%s0 + $0xe0] sm:$0xff]
    %v44 = vld [vmem:[%s0 + $0xe8] sm:$0xff]
    %v45 = vld [vmem:[%s0 + $0xf0] sm:$0xff]
    %v46 = vld [vmem:[%s0 + $0xf8] sm:$0xff]
    %v47 = vld [vmem:[%s0 + $0x100] sm:$0xff]
    %v48 = vld [vmem:[%s0 + $0x108] sm:$0xff]
    %v49 = vld [vmem:[%s0 + $0x110] sm:$0xff]
    %v50 = vld [vmem:[%s0 + $0x118] sm:$0xff]
    %v51 = vld [vmem:[%s0 + $0x120] sm:$0xff]
    %v52 = vld [vmem:[%s0 + $0x128] sm:$0xff]
    %v53 = vld [vmem:[%s0 + $0x130] sm:$0xff]
    %v54 = vld [vmem:[%s0 + $0x138] sm:$0xff]
    %v55 = vld [vmem:[%s1] sm:$0xf]
    %v57 = vlaneseq
    %v58 = vshrl.u32 %v57, 7
    %v59 = vsub.s32 0, %v58
    %v60 = vrot.slane %v55, %v59
    %v61 = vlaneseq
    %v62 = vshrl.u32 %v61, 7
    %v63 = vsub.s32 1, %v62
    %v64 = vrot.slane %v55, %v63
    %v65 = vlaneseq
    %v66 = vshrl.u32 %v65, 7
    %v67 = vsub.s32 2, %v66
    %v68 = vrot.slane %v55, %v67
    %v69 = vlaneseq
    %v70 = vshrl.u32 %v69, 7
    %v71 = vsub.s32 3, %v70
    %v72 = vrot.slane %v55, %v71
    %v77 = vmul.f32 %v15, %v60
    %v78 = vmul.f32 %v16, %v64
    %v79 = vmul.f32 %v17, %v68
    %v80 = vmul.f32 %v18, %v72
    %v81 = vmul.f32 %v19, %v60
    %v82 = vmul.f32 %v20, %v64
    %v83 = vmul.f32 %v21, %v68
    %v84 = vmul.f32 %v22, %v72
    %v85 = vmul.f32 %v23, %v60
    %v86 = vmul.f32 %v24, %v64
    %v87 = vmul.f32 %v25, %v68
    %v88 = vmul.f32 %v26, %v72
    %v89 = vmul.f32 %v27, %v60
    %v90 = vmul.f32 %v28, %v64
    %v91 = vmul.f32 %v29, %v68
    %v92 = vmul.f32 %v30, %v72
    %v93 = vmul.f32 %v31, %v60
    %v94 = vmul.f32 %v32, %v64
    %v95 = vmul.f32 %v33, %v68
    %v96 = vmul.f32 %v34, %v72
    %v97 = vmul.f32 %v35, %v60
    %v98 = vmul.f32 %v36, %v64
    %v99 = vmul.f32 %v37, %v68
    %v100 = vmul.f32 %v38, %v72
    %v101 = vmul.f32 %v39, %v60
    %v102 = vmul.f32 %v40, %v64
    %v103 = vmul.f32 %v41, %v68
    %v104 = vmul.f32 %v42, %v72
    %v105 = vmul.f32 %v43, %v60
    %v106 = vmul.f32 %v44, %v64
    %v107 = vmul.f32 %v45, %v68
    %v108 = vmul.f32 %v46, %v72
    %v109 = vmul.f32 %v47, %v60
    %v110 = vmul.f32 %v48, %v64
    %v111 = vmul.f32 %v49, %v68
    %v112 = vmul.f32 %v50, %v72
    %v113 = vmul.f32 %v51, %v60
    %v114 = vmul.f32 %v52, %v64
    %v115 = vmul.f32 %v53, %v68
    %v116 = vmul.f32 %v54, %v72
    %v117 = vld [vmem:[%s2] sm:$0xff]
    %v118 = vld [vmem:[%s2 + $0x8] sm:$0xff]
    %v119 = vld [vmem:[%s2 + $0x10] sm:$0xff]
    %v120 = vld [vmem:[%s2 + $0x18] sm:$0xff]
    %v121 = vld [vmem:[%s2 + $0x20] sm:$0xff]
    %v122 = vld [vmem:[%s2 + $0x28] sm:$0xff]
    %v123 = vld [vmem:[%s2 + $0x30] sm:$0xff]
    %v124 = vld [vmem:[%s2 + $0x38] sm:$0xff]
    %v125 = vld [vmem:[%s2 + $0x40] sm:$0xff]
    %v126 = vld [vmem:[%s2 + $0x48] sm:$0xff]
    %v127 = vld [vmem:[%s2 + $0x50] sm:$0xff]
    %v128 = vld [vmem:[%s2 + $0x58] sm:$0xff]
    %v129 = vld [vmem:[%s2 + $0x60] sm:$0xff]
    %v130 = vld [vmem:[%s2 + $0x68] sm:$0xff]
    %v131 = vld [vmem:[%s2 + $0x70] sm:$0xff]
    %v132 = vld [vmem:[%s2 + $0x78] sm:$0xff]
    %v133 = vld [vmem:[%s2 + $0x80] sm:$0xff]
    %v134 = vld [vmem:[%s2 + $0x88] sm:$0xff]
    %v135 = vld [vmem:[%s2 + $0x90] sm:$0xff]
    %v136 = vld [vmem:[%s2 + $0x98] sm:$0xff]
    %v137 = vld [vmem:[%s2 + $0xa0] sm:$0xff]
    %v138 = vld [vmem:[%s2 + $0xa8] sm:$0xff]
    %v139 = vld [vmem:[%s2 + $0xb0] sm:$0xff]
    %v140 = vld [vmem:[%s2 + $0xb8] sm:$0xff]
    %v141 = vld [vmem:[%s2 + $0xc0] sm:$0xff]
    %v142 = vld [vmem:[%s2 + $0xc8] sm:$0xff]
    %v143 = vld [vmem:[%s2 + $0xd0] sm:$0xff]
    %v144 = vld [vmem:[%s2 + $0xd8] sm:$0xff]
    %v145 = vld [vmem:[%s2 + $0xe0] sm:$0xff]
    %v146 = vld [vmem:[%s2 + $0xe8] sm:$0xff]
    %v147 = vld [vmem:[%s2 + $0xf0] sm:$0xff]
    %v148 = vld [vmem:[%s2 + $0xf8] sm:$0xff]
    %v149 = vld [vmem:[%s2 + $0x100] sm:$0xff]
    %v150 = vld [vmem:[%s2 + $0x108] sm:$0xff]
    %v151 = vld [vmem:[%s2 + $0x110] sm:$0xff]
    %v152 = vld [vmem:[%s2 + $0x118] sm:$0xff]
    %v153 = vld [vmem:[%s2 + $0x120] sm:$0xff]
    %v154 = vld [vmem:[%s2 + $0x128] sm:$0xff]
    %v155 = vld [vmem:[%s2 + $0x130] sm:$0xff]
    %v156 = vld [vmem:[%s2 + $0x138] sm:$0xff]
    %v157 = vld [vmem:[%s2 + $0x140] sm:$0xff]
    %v158 = vld [vmem:[%s2 + $0x148] sm:$0xff]
    %v159 = vld [vmem:[%s2 + $0x150] sm:$0xff]
    %v160 = vld [vmem:[%s2 + $0x158] sm:$0xff]
    %v161 = vld [vmem:[%s2 + $0x160] sm:$0xff]
    %v162 = vld [vmem:[%s2 + $0x168] sm:$0xff]
    %v163 = vld [vmem:[%s2 + $0x170] sm:$0xff]
    %v164 = vld [vmem:[%s2 + $0x178] sm:$0xff]
    %v165 = vld [vmem:[%s2 + $0x180] sm:$0xff]
    %v166 = vld [vmem:[%s2 + $0x188] sm:$0xff]
    %v167 = vld [vmem:[%s2 + $0x190] sm:$0xff]
    %v168 = vld [vmem:[%s2 + $0x198] sm:$0xff]
    %v169 = vld [vmem:[%s2 + $0x1a0] sm:$0xff]
    %v170 = vld [vmem:[%s2 + $0x1a8] sm:$0xff]
    %v171 = vld [vmem:[%s2 + $0x1b0] sm:$0xff]
    %v172 = vld [vmem:[%s2 + $0x1b8] sm:$0xff]
    %v173 = vld [vmem:[%s2 + $0x1c0] sm:$0xff]
    %v174 = vld [vmem:[%s2 + $0x1c8] sm:$0xff]
    %v175 = vld [vmem:[%s2 + $0x1d0] sm:$0xff]
    %v176 = vld [vmem:[%s2 + $0x1d8] sm:$0xff]
    %v177 = vld [vmem:[%s2 + $0x1e0] sm:$0xff]
    %v178 = vld [vmem:[%s2 + $0x1e8] sm:$0xff]
    %v179 = vld [vmem:[%s2 + $0x1f0] sm:$0xff]
    %v180 = vld [vmem:[%s2 + $0x1f8] sm:$0xff]
    %v181 = vld [vmem:[%s2 + $0x200] sm:$0xff]
    %v182 = vld [vmem:[%s2 + $0x208] sm:$0xff]
    %v183 = vld [vmem:[%s2 + $0x210] sm:$0xff]
    %v184 = vld [vmem:[%s2 + $0x218] sm:$0xff]
    %v185 = vld [vmem:[%s2 + $0x220] sm:$0xff]
    %v186 = vld [vmem:[%s2 + $0x228] sm:$0xff]
    %v187 = vld [vmem:[%s2 + $0x230] sm:$0xff]
    %v188 = vld [vmem:[%s2 + $0x238] sm:$0xff]
    %v189 = vld [vmem:[%s2 + $0x240] sm:$0xff]
    %v190 = vld [vmem:[%s2 + $0x248] sm:$0xff]
    %v191 = vld [vmem:[%s2 + $0x250] sm:$0xff]
    %v192 = vld [vmem:[%s2 + $0x258] sm:$0xff]
    %v193 = vld [vmem:[%s2 + $0x260] sm:$0xff]
    %v194 = vld [vmem:[%s2 + $0x268] sm:$0xff]
    %v195 = vld [vmem:[%s2 + $0x270] sm:$0xff]
    %v196 = vld [vmem:[%s2 + $0x278] sm:$0xff]
    %v197 = vld [vmem:[%s2 + $0x280] sm:$0xff]
    %v198 = vld [vmem:[%s2 + $0x288] sm:$0xff]
    %v199 = vld [vmem:[%s2 + $0x290] sm:$0xff]
    %v200 = vld [vmem:[%s2 + $0x298] sm:$0xff]
    %v201 = vld [vmem:[%s2 + $0x2a0] sm:$0xff]
    %v202 = vld [vmem:[%s2 + $0x2a8] sm:$0xff]
    %v203 = vld [vmem:[%s2 + $0x2b0] sm:$0xff]
    %v204 = vld [vmem:[%s2 + $0x2b8] sm:$0xff]
    %v205 = vld [vmem:[%s2 + $0x2c0] sm:$0xff]
    %v206 = vld [vmem:[%s2 + $0x2c8] sm:$0xff]
    %v207 = vld [vmem:[%s2 + $0x2d0] sm:$0xff]
    %v208 = vld [vmem:[%s2 + $0x2d8] sm:$0xff]
    %v209 = vld [vmem:[%s2 + $0x2e0] sm:$0xff]
    %v210 = vld [vmem:[%s2 + $0x2e8] sm:$0xff]
    %v211 = vld [vmem:[%s2 + $0x2f0] sm:$0xff]
    %v212 = vld [vmem:[%s2 + $0x2f8] sm:$0xff]
    %v213 = vld [vmem:[%s2 + $0x300] sm:$0xff]
    %v214 = vld [vmem:[%s2 + $0x308] sm:$0xff]
    %v215 = vld [vmem:[%s2 + $0x310] sm:$0xff]
    %v216 = vld [vmem:[%s2 + $0x318] sm:$0xff]
    %v217 = vld [vmem:[%s2 + $0x320] sm:$0xff]
    %v218 = vld [vmem:[%s2 + $0x328] sm:$0xff]
    %v219 = vld [vmem:[%s2 + $0x330] sm:$0xff]
    %v220 = vld [vmem:[%s2 + $0x338] sm:$0xff]
    %v221 = vld [vmem:[%s2 + $0x340] sm:$0xff]
    %v222 = vld [vmem:[%s2 + $0x348] sm:$0xff]
    %v223 = vld [vmem:[%s2 + $0x350] sm:$0xff]
    %v224 = vld [vmem:[%s2 + $0x358] sm:$0xff]
    %v225 = vld [vmem:[%s2 + $0x360] sm:$0xff]
    %v226 = vld [vmem:[%s2 + $0x368] sm:$0xff]
    %v227 = vld [vmem:[%s2 + $0x370] sm:$0xff]
    %v228 = vld [vmem:[%s2 + $0x378] sm:$0xff]
    %v229 = vld [vmem:[%s2 + $0x380] sm:$0xff]
    %v230 = vld [vmem:[%s2 + $0x388] sm:$0xff]
    %v231 = vld [vmem:[%s2 + $0x390] sm:$0xff]
    %v232 = vld [vmem:[%s2 + $0x398] sm:$0xff]
    %v233 = vld [vmem:[%s2 + $0x3a0] sm:$0xff]
    %v234 = vld [vmem:[%s2 + $0x3a8] sm:$0xff]
    %v235 = vld [vmem:[%s2 + $0x3b0] sm:$0xff]
    %v236 = vld [vmem:[%s2 + $0x3b8] sm:$0xff]
    %v237 = vld [vmem:[%s2 + $0x3c0] sm:$0xff]
    %v238 = vld [vmem:[%s2 + $0x3c8] sm:$0xff]
    %v239 = vld [vmem:[%s2 + $0x3d0] sm:$0xff]
    %v240 = vld [vmem:[%s2 + $0x3d8] sm:$0xff]
    %v241 = vld [vmem:[%s2 + $0x3e0] sm:$0xff]
    %v242 = vld [vmem:[%s2 + $0x3e8] sm:$0xff]
    %v243 = vld [vmem:[%s2 + $0x3f0] sm:$0xff]
    %v244 = vld [vmem:[%s2 + $0x3f8] sm:$0xff]
    %v245 = vld [vmem:[%s2 + $0x400] sm:$0xff]
    %v246 = vld [vmem:[%s2 + $0x408] sm:$0xff]
    %v247 = vld [vmem:[%s2 + $0x410] sm:$0xff]
    %v248 = vld [vmem:[%s2 + $0x418] sm:$0xff]
    %v249 = vld [vmem:[%s2 + $0x420] sm:$0xff]
    %v250 = vld [vmem:[%s2 + $0x428] sm:$0xff]
    %v251 = vld [vmem:[%s2 + $0x430] sm:$0xff]
    %v252 = vld [vmem:[%s2 + $0x438] sm:$0xff]
    %v253 = vld [vmem:[%s2 + $0x440] sm:$0xff]
    %v254 = vld [vmem:[%s2 + $0x448] sm:$0xff]
    %v255 = vld [vmem:[%s2 + $0x450] sm:$0xff]
    %v256 = vld [vmem:[%s2 + $0x458] sm:$0xff]
    %v257 = vld [vmem:[%s2 + $0x460] sm:$0xff]
    %v258 = vld [vmem:[%s2 + $0x468] sm:$0xff]
    %v259 = vld [vmem:[%s2 + $0x470] sm:$0xff]
    %v260 = vld [vmem:[%s2 + $0x478] sm:$0xff]
    %v261 = vld [vmem:[%s2 + $0x480] sm:$0xff]
    %v262 = vld [vmem:[%s2 + $0x488] sm:$0xff]
    %v263 = vld [vmem:[%s2 + $0x490] sm:$0xff]
    %v264 = vld [vmem:[%s2 + $0x498] sm:$0xff]
    %v265 = vld [vmem:[%s2 + $0x4a0] sm:$0xff]
    %v266 = vld [vmem:[%s2 + $0x4a8] sm:$0xff]
    %v267 = vld [vmem:[%s2 + $0x4b0] sm:$0xff]
    %v268 = vld [vmem:[%s2 + $0x4b8] sm:$0xff]
    %v269 = vld [vmem:[%s2 + $0x4c0] sm:$0xff]
    %v270 = vld [vmem:[%s2 + $0x4c8] sm:$0xff]
    %v271 = vld [vmem:[%s2 + $0x4d0] sm:$0xff]
    %v272 = vld [vmem:[%s2 + $0x4d8] sm:$0xff]
    %v273 = vld [vmem:[%s2 + $0x4e0] sm:$0xff]
    %v274 = vld [vmem:[%s2 + $0x4e8] sm:$0xff]
    %v275 = vld [vmem:[%s2 + $0x4f0] sm:$0xff]
    %v276 = vld [vmem:[%s2 + $0x4f8] sm:$0xff]
    %v277 = vld [vmem:[%s2 + $0x500] sm:$0xff]
    %v278 = vld [vmem:[%s2 + $0x508] sm:$0xff]
    %v279 = vld [vmem:[%s2 + $0x510] sm:$0xff]
    %v280 = vld [vmem:[%s2 + $0x518] sm:$0xff]
    %v281 = vld [vmem:[%s2 + $0x520] sm:$0xff]
    %v282 = vld [vmem:[%s2 + $0x528] sm:$0xff]
    %v283 = vld [vmem:[%s2 + $0x530] sm:$0xff]
    %v284 = vld [vmem:[%s2 + $0x538] sm:$0xff]
    %v285 = vld [vmem:[%s2 + $0x540] sm:$0xff]
    %v286 = vld [vmem:[%s2 + $0x548] sm:$0xff]
    %v287 = vld [vmem:[%s2 + $0x550] sm:$0xff]
    %v288 = vld [vmem:[%s2 + $0x558] sm:$0xff]
    %v289 = vld [vmem:[%s2 + $0x560] sm:$0xff]
    %v290 = vld [vmem:[%s2 + $0x568] sm:$0xff]
    %v291 = vld [vmem:[%s2 + $0x570] sm:$0xff]
    %v292 = vld [vmem:[%s2 + $0x578] sm:$0xff]
    %v293 = vld [vmem:[%s2 + $0x580] sm:$0xff]
    %v294 = vld [vmem:[%s2 + $0x588] sm:$0xff]
    %v295 = vld [vmem:[%s2 + $0x590] sm:$0xff]
    %v296 = vld [vmem:[%s2 + $0x598] sm:$0xff]
    %v297 = vld [vmem:[%s2 + $0x5a0] sm:$0xff]
    %v298 = vld [vmem:[%s2 + $0x5a8] sm:$0xff]
    %v299 = vld [vmem:[%s2 + $0x5b0] sm:$0xff]
    %v300 = vld [vmem:[%s2 + $0x5b8] sm:$0xff]
    %v301 = vld [vmem:[%s2 + $0x5c0] sm:$0xff]
    %v302 = vld [vmem:[%s2 + $0x5c8] sm:$0xff]
    %v303 = vld [vmem:[%s2 + $0x5d0] sm:$0xff]
    %v304 = vld [vmem:[%s2 + $0x5d8] sm:$0xff]
    %v305 = vld [vmem:[%s2 + $0x5e0] sm:$0xff]
    %v306 = vld [vmem:[%s2 + $0x5e8] sm:$0xff]
    %v307 = vld [vmem:[%s2 + $0x5f0] sm:$0xff]
    %v308 = vld [vmem:[%s2 + $0x5f8] sm:$0xff]
    %v309 = vld [vmem:[%s2 + $0x600] sm:$0xff]
    %v310 = vld [vmem:[%s2 + $0x608] sm:$0xff]
    %v311 = vld [vmem:[%s2 + $0x610] sm:$0xff]
    %v312 = vld [vmem:[%s2 + $0x618] sm:$0xff]
    %v313 = vld [vmem:[%s2 + $0x620] sm:$0xff]
    %v314 = vld [vmem:[%s2 + $0x628] sm:$0xff]
    %v315 = vld [vmem:[%s2 + $0x630] sm:$0xff]
    %v316 = vld [vmem:[%s2 + $0x638] sm:$0xff]
    %v317 = vld [vmem:[%s2 + $0x640] sm:$0xff]
    %v318 = vld [vmem:[%s2 + $0x648] sm:$0xff]
    %v319 = vld [vmem:[%s2 + $0x650] sm:$0xff]
    %v320 = vld [vmem:[%s2 + $0x658] sm:$0xff]
    %v321 = vld [vmem:[%s2 + $0x660] sm:$0xff]
    %v322 = vld [vmem:[%s2 + $0x668] sm:$0xff]
    %v323 = vld [vmem:[%s2 + $0x670] sm:$0xff]
    %v324 = vld [vmem:[%s2 + $0x678] sm:$0xff]
    %v325 = vld [vmem:[%s2 + $0x680] sm:$0xff]
    %v326 = vld [vmem:[%s2 + $0x688] sm:$0xff]
    %v327 = vld [vmem:[%s2 + $0x690] sm:$0xff]
    %v328 = vld [vmem:[%s2 + $0x698] sm:$0xff]
    %v329 = vld [vmem:[%s2 + $0x6a0] sm:$0xff]
    %v330 = vld [vmem:[%s2 + $0x6a8] sm:$0xff]
    %v331 = vld [vmem:[%s2 + $0x6b0] sm:$0xff]
    %v332 = vld [vmem:[%s2 + $0x6b8] sm:$0xff]
    %v333 = vld [vmem:[%s2 + $0x6c0] sm:$0xff]
    %v334 = vld [vmem:[%s2 + $0x6c8] sm:$0xff]
    %v335 = vld [vmem:[%s2 + $0x6d0] sm:$0xff]
    %v336 = vld [vmem:[%s2 + $0x6d8] sm:$0xff]
    %v337 = vld [vmem:[%s2 + $0x6e0] sm:$0xff]
    %v338 = vld [vmem:[%s2 + $0x6e8] sm:$0xff]
    %v339 = vld [vmem:[%s2 + $0x6f0] sm:$0xff]
    %v340 = vld [vmem:[%s2 + $0x6f8] sm:$0xff]
    %v341 = vld [vmem:[%s2 + $0x700] sm:$0xff]
    %v342 = vld [vmem:[%s2 + $0x708] sm:$0xff]
    %v343 = vld [vmem:[%s2 + $0x710] sm:$0xff]
    %v344 = vld [vmem:[%s2 + $0x718] sm:$0xff]
    %v345 = vld [vmem:[%s2 + $0x720] sm:$0xff]
    %v346 = vld [vmem:[%s2 + $0x728] sm:$0xff]
    %v347 = vld [vmem:[%s2 + $0x730] sm:$0xff]
    %v348 = vld [vmem:[%s2 + $0x738] sm:$0xff]
    %v349 = vld [vmem:[%s2 + $0x740] sm:$0xff]
    %v350 = vld [vmem:[%s2 + $0x748] sm:$0xff]
    %v351 = vld [vmem:[%s2 + $0x750] sm:$0xff]
    %v352 = vld [vmem:[%s2 + $0x758] sm:$0xff]
    %v353 = vld [vmem:[%s2 + $0x760] sm:$0xff]
    %v354 = vld [vmem:[%s2 + $0x768] sm:$0xff]
    %v355 = vld [vmem:[%s2 + $0x770] sm:$0xff]
    %v356 = vld [vmem:[%s2 + $0x778] sm:$0xff]
    %v357 = vld [vmem:[%s2 + $0x780] sm:$0xff]
    %v358 = vld [vmem:[%s2 + $0x788] sm:$0xff]
    %v359 = vld [vmem:[%s2 + $0x790] sm:$0xff]
    %v360 = vld [vmem:[%s2 + $0x798] sm:$0xff]
    %v361 = vld [vmem:[%s2 + $0x7a0] sm:$0xff]
    %v362 = vld [vmem:[%s2 + $0x7a8] sm:$0xff]
    %v363 = vld [vmem:[%s2 + $0x7b0] sm:$0xff]
    %v364 = vld [vmem:[%s2 + $0x7b8] sm:$0xff]
    %v365 = vld [vmem:[%s2 + $0x7c0] sm:$0xff]
    %v366 = vld [vmem:[%s2 + $0x7c8] sm:$0xff]
    %v367 = vld [vmem:[%s2 + $0x7d0] sm:$0xff]
    %v368 = vld [vmem:[%s2 + $0x7d8] sm:$0xff]
    %v369 = vld [vmem:[%s2 + $0x7e0] sm:$0xff]
    %v370 = vld [vmem:[%s2 + $0x7e8] sm:$0xff]
    %v371 = vld [vmem:[%s2 + $0x7f0] sm:$0xff]
    %v372 = vld [vmem:[%s2 + $0x7f8] sm:$0xff]
    %v373 = vld [vmem:[%s2 + $0x800] sm:$0xff]
    %v374 = vld [vmem:[%s2 + $0x808] sm:$0xff]
    %v375 = vld [vmem:[%s2 + $0x810] sm:$0xff]
    %v376 = vld [vmem:[%s2 + $0x818] sm:$0xff]
    %v377 = vld [vmem:[%s2 + $0x820] sm:$0xff]
    %v378 = vld [vmem:[%s2 + $0x828] sm:$0xff]
    %v379 = vld [vmem:[%s2 + $0x830] sm:$0xff]
    %v380 = vld [vmem:[%s2 + $0x838] sm:$0xff]
    %v381 = vld [vmem:[%s2 + $0x840] sm:$0xff]
    %v382 = vld [vmem:[%s2 + $0x848] sm:$0xff]
    %v383 = vld [vmem:[%s2 + $0x850] sm:$0xff]
    %v384 = vld [vmem:[%s2 + $0x858] sm:$0xff]
    %v385 = vld [vmem:[%s2 + $0x860] sm:$0xff]
    %v386 = vld [vmem:[%s2 + $0x868] sm:$0xff]
    %v387 = vld [vmem:[%s2 + $0x870] sm:$0xff]
    %v388 = vld [vmem:[%s2 + $0x878] sm:$0xff]
    %v389 = vld [vmem:[%s2 + $0x880] sm:$0xff]
    %v390 = vld [vmem:[%s2 + $0x888] sm:$0xff]
    %v391 = vld [vmem:[%s2 + $0x890] sm:$0xff]
    %v392 = vld [vmem:[%s2 + $0x898] sm:$0xff]
    %v393 = vld [vmem:[%s2 + $0x8a0] sm:$0xff]
    %v394 = vld [vmem:[%s2 + $0x8a8] sm:$0xff]
    %v395 = vld [vmem:[%s2 + $0x8b0] sm:$0xff]
    %v396 = vld [vmem:[%s2 + $0x8b8] sm:$0xff]
    %v397 = vld [vmem:[%s2 + $0x8c0] sm:$0xff]
    %v398 = vld [vmem:[%s2 + $0x8c8] sm:$0xff]
    %v399 = vld [vmem:[%s2 + $0x8d0] sm:$0xff]
    %v400 = vld [vmem:[%s2 + $0x8d8] sm:$0xff]
    %v401 = vld [vmem:[%s2 + $0x8e0] sm:$0xff]
    %v402 = vld [vmem:[%s2 + $0x8e8] sm:$0xff]
    %v403 = vld [vmem:[%s2 + $0x8f0] sm:$0xff]
    %v404 = vld [vmem:[%s2 + $0x8f8] sm:$0xff]
    %v405 = vld [vmem:[%s2 + $0x900] sm:$0xff]
    %v406 = vld [vmem:[%s2 + $0x908] sm:$0xff]
    %v407 = vld [vmem:[%s2 + $0x910] sm:$0xff]
    %v408 = vld [vmem:[%s2 + $0x918] sm:$0xff]
    %v409 = vld [vmem:[%s2 + $0x920] sm:$0xff]
    %v410 = vld [vmem:[%s2 + $0x928] sm:$0xff]
    %v411 = vld [vmem:[%s2 + $0x930] sm:$0xff]
    %v412 = vld [vmem:[%s2 + $0x938] sm:$0xff]
    %v413 = vld [vmem:[%s2 + $0x940] sm:$0xff]
    %v414 = vld [vmem:[%s2 + $0x948] sm:$0xff]
    %v415 = vld [vmem:[%s2 + $0x950] sm:$0xff]
    %v416 = vld [vmem:[%s2 + $0x958] sm:$0xff]
    %v417 = vld [vmem:[%s2 + $0x960] sm:$0xff]
    %v418 = vld [vmem:[%s2 + $0x968] sm:$0xff]
    %v419 = vld [vmem:[%s2 + $0x970] sm:$0xff]
    %v420 = vld [vmem:[%s2 + $0x978] sm:$0xff]
    %v421 = vld [vmem:[%s2 + $0x980] sm:$0xff]
    %v422 = vld [vmem:[%s2 + $0x988] sm:$0xff]
    %v423 = vld [vmem:[%s2 + $0x990] sm:$0xff]
    %v424 = vld [vmem:[%s2 + $0x998] sm:$0xff]
    %v425 = vld [vmem:[%s2 + $0x9a0] sm:$0xff]
    %v426 = vld [vmem:[%s2 + $0x9a8] sm:$0xff]
    %v427 = vld [vmem:[%s2 + $0x9b0] sm:$0xff]
    %v428 = vld [vmem:[%s2 + $0x9b8] sm:$0xff]
    %v429 = vld [vmem:[%s2 + $0x9c0] sm:$0xff]
    %v430 = vld [vmem:[%s2 + $0x9c8] sm:$0xff]
    %v431 = vld [vmem:[%s2 + $0x9d0] sm:$0xff]
    %v432 = vld [vmem:[%s2 + $0x9d8] sm:$0xff]
    %v433 = vld [vmem:[%s2 + $0x9e0] sm:$0xff]
    %v434 = vld [vmem:[%s2 + $0x9e8] sm:$0xff]
    %v435 = vld [vmem:[%s2 + $0x9f0] sm:$0xff]
    %v436 = vld [vmem:[%s2 + $0x9f8] sm:$0xff]
    %v437 = vld [vmem:[%s2 + $0xa00] sm:$0xff]
    %v438 = vld [vmem:[%s2 + $0xa08] sm:$0xff]
    %v439 = vld [vmem:[%s2 + $0xa10] sm:$0xff]
    %v440 = vld [vmem:[%s2 + $0xa18] sm:$0xff]
    %v441 = vld [vmem:[%s2 + $0xa20] sm:$0xff]
    %v442 = vld [vmem:[%s2 + $0xa28] sm:$0xff]
    %v443 = vld [vmem:[%s2 + $0xa30] sm:$0xff]
    %v444 = vld [vmem:[%s2 + $0xa38] sm:$0xff]
    %v445 = vld [vmem:[%s2 + $0xa40] sm:$0xff]
    %v446 = vld [vmem:[%s2 + $0xa48] sm:$0xff]
    %v447 = vld [vmem:[%s2 + $0xa50] sm:$0xff]
    %v448 = vld [vmem:[%s2 + $0xa58] sm:$0xff]
    %v449 = vld [vmem:[%s2 + $0xa60] sm:$0xff]
    %v450 = vld [vmem:[%s2 + $0xa68] sm:$0xff]
    %v451 = vld [vmem:[%s2 + $0xa70] sm:$0xff]
    %v452 = vld [vmem:[%s2 + $0xa78] sm:$0xff]
    %v453 = vld [vmem:[%s2 + $0xa80] sm:$0xff]
    %v454 = vld [vmem:[%s2 + $0xa88] sm:$0xff]
    %v455 = vld [vmem:[%s2 + $0xa90] sm:$0xff]
    %v456 = vld [vmem:[%s2 + $0xa98] sm:$0xff]
    %v457 = vld [vmem:[%s2 + $0xaa0] sm:$0xff]
    %v458 = vld [vmem:[%s2 + $0xaa8] sm:$0xff]
    %v459 = vld [vmem:[%s2 + $0xab0] sm:$0xff]
    %v460 = vld [vmem:[%s2 + $0xab8] sm:$0xff]
    %v461 = vld [vmem:[%s2 + $0xac0] sm:$0xff]
    %v462 = vld [vmem:[%s2 + $0xac8] sm:$0xff]
    %v463 = vld [vmem:[%s2 + $0xad0] sm:$0xff]
    %v464 = vld [vmem:[%s2 + $0xad8] sm:$0xff]
    %v465 = vld [vmem:[%s2 + $0xae0] sm:$0xff]
    %v466 = vld [vmem:[%s2 + $0xae8] sm:$0xff]
    %v467 = vld [vmem:[%s2 + $0xaf0] sm:$0xff]
    %v468 = vld [vmem:[%s2 + $0xaf8] sm:$0xff]
    %v469 = vld [vmem:[%s2 + $0xb00] sm:$0xff]
    %v470 = vld [vmem:[%s2 + $0xb08] sm:$0xff]
    %v471 = vld [vmem:[%s2 + $0xb10] sm:$0xff]
    %v472 = vld [vmem:[%s2 + $0xb18] sm:$0xff]
    %v473 = vld [vmem:[%s2 + $0xb20] sm:$0xff]
    %v474 = vld [vmem:[%s2 + $0xb28] sm:$0xff]
    %v475 = vld [vmem:[%s2 + $0xb30] sm:$0xff]
    %v476 = vld [vmem:[%s2 + $0xb38] sm:$0xff]
    %v477 = vld [vmem:[%s2 + $0xb40] sm:$0xff]
    %v478 = vld [vmem:[%s2 + $0xb48] sm:$0xff]
    %v479 = vld [vmem:[%s2 + $0xb50] sm:$0xff]
    %v480 = vld [vmem:[%s2 + $0xb58] sm:$0xff]
    %v481 = vld [vmem:[%s2 + $0xb60] sm:$0xff]
    %v482 = vld [vmem:[%s2 + $0xb68] sm:$0xff]
    %v483 = vld [vmem:[%s2 + $0xb70] sm:$0xff]
    %v484 = vld [vmem:[%s2 + $0xb78] sm:$0xff]
    %v485 = vld [vmem:[%s2 + $0xb80] sm:$0xff]
    %v486 = vld [vmem:[%s2 + $0xb88] sm:$0xff]
    %v487 = vld [vmem:[%s2 + $0xb90] sm:$0xff]
    %v488 = vld [vmem:[%s2 + $0xb98] sm:$0xff]
    %v489 = vld [vmem:[%s2 + $0xba0] sm:$0xff]
    %v490 = vld [vmem:[%s2 + $0xba8] sm:$0xff]
    %v491 = vld [vmem:[%s2 + $0xbb0] sm:$0xff]
    %v492 = vld [vmem:[%s2 + $0xbb8] sm:$0xff]
    %v493 = vld [vmem:[%s2 + $0xbc0] sm:$0xff]
    %v494 = vld [vmem:[%s2 + $0xbc8] sm:$0xff]
    %v495 = vld [vmem:[%s2 + $0xbd0] sm:$0xff]
    %v496 = vld [vmem:[%s2 + $0xbd8] sm:$0xff]
    %v497 = vld [vmem:[%s2 + $0xbe0] sm:$0xff]
    %v498 = vld [vmem:[%s2 + $0xbe8] sm:$0xff]
    %v499 = vld [vmem:[%s2 + $0xbf0] sm:$0xff]
    %v500 = vld [vmem:[%s2 + $0xbf8] sm:$0xff]
    %v501 = vld [vmem:[%s2 + $0xc00] sm:$0xff]
    %v502 = vld [vmem:[%s2 + $0xc08] sm:$0xff]
    %v503 = vld [vmem:[%s2 + $0xc10] sm:$0xff]
    %v504 = vld [vmem:[%s2 + $0xc18] sm:$0xff]
    %v505 = vld [vmem:[%s2 + $0xc20] sm:$0xff]
    %v506 = vld [vmem:[%s2 + $0xc28] sm:$0xff]
    %v507 = vld [vmem:[%s2 + $0xc30] sm:$0xff]
    %v508 = vld [vmem:[%s2 + $0xc38] sm:$0xff]
    %v509 = vld [vmem:[%s2 + $0xc40] sm:$0xff]
    %v510 = vld [vmem:[%s2 + $0xc48] sm:$0xff]
    %v511 = vld [vmem:[%s2 + $0xc50] sm:$0xff]
    %v512 = vld [vmem:[%s2 + $0xc58] sm:$0xff]
    %v513 = vld [vmem:[%s2 + $0xc60] sm:$0xff]
    %v514 = vld [vmem:[%s2 + $0xc68] sm:$0xff]
    %v515 = vld [vmem:[%s2 + $0xc70] sm:$0xff]
    %v516 = vld [vmem:[%s2 + $0xc78] sm:$0xff]
    %v517 = vld [vmem:[%s2 + $0xc80] sm:$0xff]
    %v518 = vld [vmem:[%s2 + $0xc88] sm:$0xff]
    %v519 = vld [vmem:[%s2 + $0xc90] sm:$0xff]
    %v520 = vld [vmem:[%s2 + $0xc98] sm:$0xff]
    %v521 = vld [vmem:[%s2 + $0xca0] sm:$0xff]
    %v522 = vld [vmem:[%s2 + $0xca8] sm:$0xff]
    %v523 = vld [vmem:[%s2 + $0xcb0] sm:$0xff]
    %v524 = vld [vmem:[%s2 + $0xcb8] sm:$0xff]
    %v525 = vld [vmem:[%s2 + $0xcc0] sm:$0xff]
    %v526 = vld [vmem:[%s2 + $0xcc8] sm:$0xff]
    %v527 = vld [vmem:[%s2 + $0xcd0] sm:$0xff]
    %v528 = vld [vmem:[%s2 + $0xcd8] sm:$0xff]
    %v529 = vld [vmem:[%s2 + $0xce0] sm:$0xff]
    %v530 = vld [vmem:[%s2 + $0xce8] sm:$0xff]
    %v531 = vld [vmem:[%s2 + $0xcf0] sm:$0xff]
    %v532 = vld [vmem:[%s2 + $0xcf8] sm:$0xff]
    %v533 = vld [vmem:[%s2 + $0xd00] sm:$0xff]
    %v534 = vld [vmem:[%s2 + $0xd08] sm:$0xff]
    %v535 = vld [vmem:[%s2 + $0xd10] sm:$0xff]
    %v536 = vld [vmem:[%s2 + $0xd18] sm:$0xff]
    %vm537 = vcmask 785408
    %v539 = vsel %vm537, %v80, 0
    %v542 = vsel %vm537, %v84, 0
    %v545 = vsel %vm537, %v88, 0
    %v548 = vsel %vm537, %v92, 0
    %v551 = vsel %vm537, %v96, 0
    %v554 = vsel %vm537, %v100, 0
    %v557 = vsel %vm537, %v104, 0
    %v560 = vsel %vm537, %v108, 0
    %v563 = vsel %vm537, %v112, 0
    %v566 = vsel %vm537, %v116, 0
    %568 = vmatprep.subr.mxu0 %v118
    %569 = vmatpush1.msra.mxu0 %v117
    %570 = vmatprep.subr.mxu0 %v125
    %571 = vmatpush1.msra.mxu0 %v124
    %572 = vmatprep.subr.mxu0 %v132
    %573 = vmatpush1.msra.mxu0 %v131
    %574 = vmatprep.subr.mxu0 %v139
    %575 = vmatpush1.msra.mxu0 %v138
    %576 = vmatprep.subr.mxu0 %v146
    %577 = vmatpush1.msra.mxu0 %v145
    %578 = vmatprep.subr.mxu0 %v153
    %579 = vmatpush1.msra.mxu0 %v152
    %580 = vmatprep.subr.mxu0 %v160
    %581 = vmatpush1.msra.mxu0 %v159
    %582 = vmatprep.subr.mxu0 %v167
    %583 = vmatpush1.msra.mxu0 %v166
    %584 = vmatprep.subr.mxu0 %v174
    %585 = vmatpush1.msra.mxu0 %v173
    %586 = vmatprep.subr.mxu0 %v181
    %587 = vmatpush1.msra.mxu0 %v180
    %588 = vmatprep.subr.mxu0 %v188
    %589 = vmatpush1.msra.mxu0 %v187
    %590 = vmatprep.subr.mxu0 %v195
    %591 = vmatpush1.msra.mxu0 %v194
    %592 = vmatprep.subr.mxu0 %v202
    %593 = vmatpush1.msra.mxu0 %v201
    %594 = vmatprep.subr.mxu0 %v209
    %595 = vmatpush1.msra.mxu0 %v208
    %596 = vmatprep.subr.mxu0 %v216
    %597 = vmatpush1.msra.mxu0 %v215
    %598 = vmatprep.subr.mxu0 %v223
    %599 = vmatpush1.msra.mxu0 %v222
    %600 = vmatprep.subr.mxu0 %v230
    %601 = vmatpush1.msra.mxu0 %v229
    %602 = vmatprep.subr.mxu0 %v237
    %603 = vmatpush1.msra.mxu0 %v236
    %604 = vmatprep.subr.mxu0 %v244
    %605 = vmatpush1.msra.mxu0 %v243
    %606 = vmatprep.subr.mxu0 %v251
    %607 = vmatpush1.msra.mxu0 %v250
    %608 = vmatprep.subr.mxu0 %v258
    %609 = vmatpush1.msra.mxu0 %v257
    %610 = vmatprep.subr.mxu0 %v265
    %611 = vmatpush1.msra.mxu0 %v264
    %612 = vmatprep.subr.mxu0 %v272
    %613 = vmatpush1.msra.mxu0 %v271
    %614 = vmatprep.subr.mxu0 %v279
    %615 = vmatpush1.msra.mxu0 %v278
    %616 = vmatprep.subr.mxu0 %v286
    %617 = vmatpush1.msra.mxu0 %v285
    %618 = vmatprep.subr.mxu0 %v293
    %619 = vmatpush1.msra.mxu0 %v292
    %620 = vmatprep.subr.mxu0 %v300
    %621 = vmatpush1.msra.mxu0 %v299
    %622 = vmatprep.subr.mxu0 %v307
    %623 = vmatpush1.msra.mxu0 %v306
    %624 = vmatprep.subr.mxu0 %v314
    %625 = vmatpush1.msra.mxu0 %v313
    %626 = vmatprep.subr.mxu0 %v321
    %627 = vmatpush1.msra.mxu0 %v320
    %628 = vmatprep.subr.mxu0 %v328
    %629 = vmatpush1.msra.mxu0 %v327
    %630 = vmatprep.subr.mxu0 %v335
    %631 = vmatpush1.msra.mxu0 %v334
    %632 = vmatprep.mubr.f32.mxu0 %v78
    %633 = vmatmul.mubr.f32.gmra.mrb[0].mxu0 %v77
    %v634 = vpop.f32.mrb[0].mxu0
    %v635 = vadd.f32 0.0, %v634
    %v636 = vpop.f32.mrb[0].mxu0
    %v637 = vadd.f32 0.0, %v636
    %638 = vmatprep.mubr.f32.mxu0 %v82
    %639 = vmatmul.mubr.f32.gmra.mrb[0].mxu0 %v81
    %v640 = vpop.f32.mrb[0].mxu0
    %v641 = vadd.f32 0.0, %v640
    %v642 = vpop.f32.mrb[0].mxu0
    %v643 = vadd.f32 0.0, %v642
    %644 = vmatprep.mubr.f32.mxu0 %v86
    %645 = vmatmul.mubr.f32.gmra.mrb[0].mxu0 %v85
    %v646 = vpop.f32.mrb[0].mxu0
    %v647 = vadd.f32 0.0, %v646
    %v648 = vpop.f32.mrb[0].mxu0
    %v649 = vadd.f32 0.0, %v648
    %650 = vmatprep.mubr.f32.mxu0 %v90
    %651 = vmatmul.mubr.f32.gmra.mrb[0].mxu0 %v89
    %v652 = vpop.f32.mrb[0].mxu0
    %v653 = vadd.f32 0.0, %v652
    %v654 = vpop.f32.mrb[0].mxu0
    %v655 = vadd.f32 0.0, %v654
    %656 = vmatprep.mubr.f32.mxu0 %v94
    %657 = vmatmul.mubr.f32.gmra.mrb[0].mxu0 %v93
    %v658 = vpop.f32.mrb[0].mxu0
    %v659 = vadd.f32 0.0, %v658
    %v660 = vpop.f32.mrb[0].mxu0
    %v661 = vadd.f32 0.0, %v660
    %662 = vmatprep.mubr.f32.mxu0 %v98
    %663 = vmatmul.mubr.f32.gmra.mrb[0].mxu0 %v97
    %v664 = vpop.f32.mrb[0].mxu0
    %v665 = vadd.f32 0.0, %v664
    %v666 = vpop.f32.mrb[0].mxu0
    %v667 = vadd.f32 0.0, %v666
    %668 = vmatprep.mubr.f32.mxu0 %v102
    %669 = vmatmul.mubr.f32.gmra.mrb[0].mxu0 %v101
    %v670 = vpop.f32.mrb[0].mxu0
    %v671 = vadd.f32 0.0, %v670
    %v672 = vpop.f32.mrb[0].mxu0
    %v673 = vadd.f32 0.0, %v672
    %674 = vmatprep.mubr.f32.mxu0 %v106
    %675 = vmatmul.mubr.f32.gmra.mrb[0].mxu0 %v105
    %v676 = vpop.f32.mrb[0].mxu0
    %v677 = vadd.f32 0.0, %v676
    %v678 = vpop.f32.mrb[0].mxu0
    %v679 = vadd.f32 0.0, %v678
    %680 = vmatprep.mubr.f32.mxu0 %v110
    %681 = vmatmul.mubr.f32.gmra.mrb[0].mxu0 %v109
    %v682 = vpop.f32.mrb[0].mxu0
    %v683 = vadd.f32 0.0, %v682
    %v684 = vpop.f32.mrb[0].mxu0
    %v685 = vadd.f32 0.0, %v684
    %686 = vmatprep.mubr.f32.mxu0 %v114
    %687 = vmatmul.mubr.f32.gmra.mrb[0].mxu0 %v113
    %v688 = vpop.f32.mrb[0].mxu0
    %v689 = vadd.f32 0.0, %v688
    %v690 = vpop.f32.mrb[0].mxu0
    %v691 = vadd.f32 0.0, %v690
    %692 = vdwg.mxu0
    %693 = vmatprep.subr.mxu0 %v342
    %694 = vmatpush1.msra.mxu0 %v341
    %695 = vmatprep.subr.mxu0 %v349
    %696 = vmatpush1.msra.mxu0 %v348
    %697 = vmatprep.subr.mxu0 %v356
    %698 = vmatpush1.msra.mxu0 %v355
    %699 = vmatprep.subr.mxu0 %v363
    %700 = vmatpush1.msra.mxu0 %v362
    %701 = vmatprep.subr.mxu0 %v370
    %702 = vmatpush1.msra.mxu0 %v369
    %703 = vmatprep.subr.mxu0 %v377
    %704 = vmatpush1.msra.mxu0 %v376
    %705 = vmatprep.subr.mxu0 %v384
    %706 = vmatpush1.msra.mxu0 %v383
    %707 = vmatprep.subr.mxu0 %v391
    %708 = vmatpush1.msra.mxu0 %v390
    %709 = vmatprep.subr.mxu0 %v398
    %710 = vmatpush1.msra.mxu0 %v397
    %711 = vmatprep.subr.mxu0 %v405
    %712 = vmatpush1.msra.mxu0 %v404
    %713 = vmatprep.subr.mxu0 %v412
    %714 = vmatpush1.msra.mxu0 %v411
    %715 = vmatprep.subr.mxu0 %v419
    %716 = vmatpush1.msra.mxu0 %v418
    %717 = vmatprep.subr.mxu0 %v426
    %718 = vmatpush1.msra.mxu0 %v425
    %719 = vmatprep.subr.mxu0 %v433
    %720 = vmatpush1.msra.mxu0 %v432
    %721 = vmatprep.subr.mxu0 %v440
    %722 = vmatpush1.msra.mxu0 %v439
    %723 = vmatprep.subr.mxu0 %v447
    %724 = vmatpush1.msra.mxu0 %v446
    %725 = vmatprep.subr.mxu0 %v454
    %726 = vmatpush1.msra.mxu0 %v453
    %727 = vmatprep.subr.mxu0 %v461
    %728 = vmatpush1.msra.mxu0 %v460
    %729 = vmatprep.subr.mxu0 %v468
    %730 = vmatpush1.msra.mxu0 %v467
    %731 = vmatprep.subr.mxu0 %v475
    %732 = vmatpush1.msra.mxu0 %v474
    %733 = vmatprep.subr.mxu0 %v482
    %734 = vmatpush1.msra.mxu0 %v481
    %735 = vmatprep.subr.mxu0 %v489
    %736 = vmatpush1.msra.mxu0 %v488
    %737 = vmatprep.subr.mxu0 %v496
    %738 = vmatpush1.msra.mxu0 %v495
    %739 = vmatprep.subr.mxu0 %v503
    %740 = vmatpush1.msra.mxu0 %v502
    %741 = vmatprep.subr.mxu0 %v510
    %742 = vmatpush1.msra.mxu0 %v509
    %743 = vmatprep.subr.mxu0 %v517
    %744 = vmatpush1.msra.mxu0 %v516
    %745 = vmatprep.subr.mxu0 %v524
    %746 = vmatpush1.msra.mxu0 %v523
    %747 = vmatprep.subr.mxu0 %v531
    %748 = vmatpush1.msra.mxu0 %v530
    %749 = vmatprep.subr.mxu0 0.0
    %750 = vmatpush1.msra.mxu0 0.0
    %751 = vmatprep.subr.mxu0 0.0
    %752 = vmatpush1.msra.mxu0 0.0
    %753 = vmatprep.subr.mxu0 0.0
    %754 = vmatpush1.msra.mxu0 0.0
    %755 = vmatprep.subr.mxu0 0.0
    %756 = vmatpush1.msra.mxu0 0.0
    %757 = vmatprep.mubr.f32.mxu0 %v539
    %758 = vmatmul.mubr.f32.gmra.mrb[0].mxu0 %v79
    %v759 = vpop.f32.mrb[0].mxu0
    %v760 = vadd.f32 %v635, %v759
    %v761 = vpop.f32.mrb[0].mxu0
    %v762 = vadd.f32 %v637, %v761
    %763 = vmatprep.mubr.f32.mxu0 %v542
    %764 = vmatmul.mubr.f32.gmra.mrb[0].mxu0 %v83
    %v765 = vpop.f32.mrb[0].mxu0
    %v766 = vadd.f32 %v641, %v765
    %v767 = vpop.f32.mrb[0].mxu0
    %v768 = vadd.f32 %v643, %v767
    %769 = vmatprep.mubr.f32.mxu0 %v545
    %770 = vmatmul.mubr.f32.gmra.mrb[0].mxu0 %v87
    %v771 = vpop.f32.mrb[0].mxu0
    %v772 = vadd.f32 %v647, %v771
    %v773 = vpop.f32.mrb[0].mxu0
    %v774 = vadd.f32 %v649, %v773
    %775 = vmatprep.mubr.f32.mxu0 %v548
    %776 = vmatmul.mubr.f32.gmra.mrb[0].mxu0 %v91
    %v777 = vpop.f32.mrb[0].mxu0
    %v778 = vadd.f32 %v653, %v777
    %v779 = vpop.f32.mrb[0].mxu0
    %v780 = vadd.f32 %v655, %v779
    %781 = vmatprep.mubr.f32.mxu0 %v551
    %782 = vmatmul.mubr.f32.gmra.mrb[0].mxu0 %v95
    %v783 = vpop.f32.mrb[0].mxu0
    %v784 = vadd.f32 %v659, %v783
    %v785 = vpop.f32.mrb[0].mxu0
    %v786 = vadd.f32 %v661, %v785
    %787 = vmatprep.mubr.f32.mxu0 %v554
    %788 = vmatmul.mubr.f32.gmra.mrb[0].mxu0 %v99
    %v789 = vpop.f32.mrb[0].mxu0
    %v790 = vadd.f32 %v665, %v789
    %v791 = vpop.f32.mrb[0].mxu0
    %v792 = vadd.f32 %v667, %v791
    %793 = vmatprep.mubr.f32.mxu0 %v557
    %794 = vmatmul.mubr.f32.gmra.mrb[0].mxu0 %v103
    %v795 = vpop.f32.mrb[0].mxu0
    %v796 = vadd.f32 %v671, %v795
    %v797 = vpop.f32.mrb[0].mxu0
    %v798 = vadd.f32 %v673, %v797
    %799 = vmatprep.mubr.f32.mxu0 %v560
    %800 = vmatmul.mubr.f32.gmra.mrb[0].mxu0 %v107
    %v801 = vpop.f32.mrb[0].mxu0
    %v802 = vadd.f32 %v677, %v801
    %v803 = vpop.f32.mrb[0].mxu0
    %v804 = vadd.f32 %v679, %v803
    %805 = vmatprep.mubr.f32.mxu0 %v563
    %806 = vmatmul.mubr.f32.gmra.mrb[0].mxu0 %v111
    %v807 = vpop.f32.mrb[0].mxu0
    %v808 = vadd.f32 %v683, %v807
    %v809 = vpop.f32.mrb[0].mxu0
    %v810 = vadd.f32 %v685, %v809
    %811 = vmatprep.mubr.f32.mxu0 %v566
    %812 = vmatmul.mubr.f32.gmra.mrb[0].mxu0 %v115
    %v813 = vpop.f32.mrb[0].mxu0
    %v814 = vadd.f32 %v689, %v813
    %v815 = vpop.f32.mrb[0].mxu0
    %v816 = vadd.f32 %v691, %v815
    %817 = vdwg.mxu0
    %818 = vmatprep.subr.mxu0 %v120
    %819 = vmatpush1.msra.mxu0 %v119
    %820 = vmatprep.subr.mxu0 %v127
    %821 = vmatpush1.msra.mxu0 %v126
    %822 = vmatprep.subr.mxu0 %v134
    %823 = vmatpush1.msra.mxu0 %v133
    %824 = vmatprep.subr.mxu0 %v141
    %825 = vmatpush1.msra.mxu0 %v140
    %826 = vmatprep.subr.mxu0 %v148
    %827 = vmatpush1.msra.mxu0 %v147
    %828 = vmatprep.subr.mxu0 %v155
    %829 = vmatpush1.msra.mxu0 %v154
    %830 = vmatprep.subr.mxu0 %v162
    %831 = vmatpush1.msra.mxu0 %v161
    %832 = vmatprep.subr.mxu0 %v169
    %833 = vmatpush1.msra.mxu0 %v168
    %834 = vmatprep.subr.mxu0 %v176
    %835 = vmatpush1.msra.mxu0 %v175
    %836 = vmatprep.subr.mxu0 %v183
    %837 = vmatpush1.msra.mxu0 %v182
    %838 = vmatprep.subr.mxu0 %v190
    %839 = vmatpush1.msra.mxu0 %v189
    %840 = vmatprep.subr.mxu0 %v197
    %841 = vmatpush1.msra.mxu0 %v196
    %842 = vmatprep.subr.mxu0 %v204
    %843 = vmatpush1.msra.mxu0 %v203
    %844 = vmatprep.subr.mxu0 %v211
    %845 = vmatpush1.msra.mxu0 %v210
    %846 = vmatprep.subr.mxu0 %v218
    %847 = vmatpush1.msra.mxu0 %v217
    %848 = vmatprep.subr.mxu0 %v225
    %849 = vmatpush1.msra.mxu0 %v224
    %850 = vmatprep.subr.mxu0 %v232
    %851 = vmatpush1.msra.mxu0 %v231
    %852 = vmatprep.subr.mxu0 %v239
    %853 = vmatpush1.msra.mxu0 %v238
    %854 = vmatprep.subr.mxu0 %v246
    %855 = vmatpush1.msra.mxu0 %v245
    %856 = vmatprep.subr.mxu0 %v253
    %857 = vmatpush1.msra.mxu0 %v252
    %858 = vmatprep.subr.mxu0 %v260
    %859 = vmatpush1.msra.mxu0 %v259
    %860 = vmatprep.subr.mxu0 %v267
    %861 = vmatpush1.msra.mxu0 %v266
    %862 = vmatprep.subr.mxu0 %v274
    %863 = vmatpush1.msra.mxu0 %v273
    %864 = vmatprep.subr.mxu0 %v281
    %865 = vmatpush1.msra.mxu0 %v280
    %866 = vmatprep.subr.mxu0 %v288
    %867 = vmatpush1.msra.mxu0 %v287
    %868 = vmatprep.subr.mxu0 %v295
    %869 = vmatpush1.msra.mxu0 %v294
    %870 = vmatprep.subr.mxu0 %v302
    %871 = vmatpush1.msra.mxu0 %v301
    %872 = vmatprep.subr.mxu0 %v309
    %873 = vmatpush1.msra.mxu0 %v308
    %874 = vmatprep.subr.mxu0 %v316
    %875 = vmatpush1.msra.mxu0 %v315
    %876 = vmatprep.subr.mxu0 %v323
    %877 = vmatpush1.msra.mxu0 %v322
    %878 = vmatprep.subr.mxu0 %v330
    %879 = vmatpush1.msra.mxu0 %v329
    %880 = vmatprep.subr.mxu0 %v337
    %881 = vmatpush1.msra.mxu0 %v336
    %882 = vmatprep.mubr.f32.mxu0 %v78
    %883 = vmatmul.mubr.f32.gmra.mrb[0].mxu0 %v77
    %v884 = vpop.f32.mrb[0].mxu0
    %v885 = vadd.f32 0.0, %v884
    %v886 = vpop.f32.mrb[0].mxu0
    %v887 = vadd.f32 0.0, %v886
    %888 = vmatprep.mubr.f32.mxu0 %v82
    %889 = vmatmul.mubr.f32.gmra.mrb[0].mxu0 %v81
    %v890 = vpop.f32.mrb[0].mxu0
    %v891 = vadd.f32 0.0, %v890
    %v892 = vpop.f32.mrb[0].mxu0
    %v893 = vadd.f32 0.0, %v892
    %894 = vmatprep.mubr.f32.mxu0 %v86
    %895 = vmatmul.mubr.f32.gmra.mrb[0].mxu0 %v85
    %v896 = vpop.f32.mrb[0].mxu0
    %v897 = vadd.f32 0.0, %v896
    %v898 = vpop.f32.mrb[0].mxu0
    %v899 = vadd.f32 0.0, %v898
    %900 = vmatprep.mubr.f32.mxu0 %v90
    %901 = vmatmul.mubr.f32.gmra.mrb[0].mxu0 %v89
    %v902 = vpop.f32.mrb[0].mxu0
    %v903 = vadd.f32 0.0, %v902
    %v904 = vpop.f32.mrb[0].mxu0
    %v905 = vadd.f32 0.0, %v904
    %906 = vmatprep.mubr.f32.mxu0 %v94
    %907 = vmatmul.mubr.f32.gmra.mrb[0].mxu0 %v93
    %v908 = vpop.f32.mrb[0].mxu0
    %v909 = vadd.f32 0.0, %v908
    %v910 = vpop.f32.mrb[0].mxu0
    %v911 = vadd.f32 0.0, %v910
    %912 = vmatprep.mubr.f32.mxu0 %v98
    %913 = vmatmul.mubr.f32.gmra.mrb[0].mxu0 %v97
    %v914 = vpop.f32.mrb[0].mxu0
    %v915 = vadd.f32 0.0, %v914
    %v916 = vpop.f32.mrb[0].mxu0
    %v917 = vadd.f32 0.0, %v916
    %918 = vmatprep.mubr.f32.mxu0 %v102
    %919 = vmatmul.mubr.f32.gmra.mrb[0].mxu0 %v101
    %v920 = vpop.f32.mrb[0].mxu0
    %v921 = vadd.f32 0.0, %v920
    %v922 = vpop.f32.mrb[0].mxu0
    %v923 = vadd.f32 0.0, %v922
    %924 = vmatprep.mubr.f32.mxu0 %v106
    %925 = vmatmul.mubr.f32.gmra.mrb[0].mxu0 %v105
    %v926 = vpop.f32.mrb[0].mxu0
    %v927 = vadd.f32 0.0, %v926
    %v928 = vpop.f32.mrb[0].mxu0
    %v929 = vadd.f32 0.0, %v928
    %930 = vmatprep.mubr.f32.mxu0 %v110
    %931 = vmatmul.mubr.f32.gmra.mrb[0].mxu0 %v109
    %v932 = vpop.f32.mrb[0].mxu0
    %v933 = vadd.f32 0.0, %v932
    %v934 = vpop.f32.mrb[0].mxu0
    %v935 = vadd.f32 0.0, %v934
    %936 = vmatprep.mubr.f32.mxu0 %v114
    %937 = vmatmul.mubr.f32.gmra.mrb[0].mxu0 %v113
    %v938 = vpop.f32.mrb[0].mxu0
    %v939 = vadd.f32 0.0, %v938
    %v940 = vpop.f32.mrb[0].mxu0
    %v941 = vadd.f32 0.0, %v940
    %942 = vdwg.mxu0
    %943 = vmatprep.subr.mxu0 %v344
    %944 = vmatpush1.msra.mxu0 %v343
    %945 = vmatprep.subr.mxu0 %v351
    %946 = vmatpush1.msra.mxu0 %v350
    %947 = vmatprep.subr.mxu0 %v358
    %948 = vmatpush1.msra.mxu0 %v357
    %949 = vmatprep.subr.mxu0 %v365
    %950 = vmatpush1.msra.mxu0 %v364
    %951 = vmatprep.subr.mxu0 %v372
    %952 = vmatpush1.msra.mxu0 %v371
    %953 = vmatprep.subr.mxu0 %v379
    %954 = vmatpush1.msra.mxu0 %v378
    %955 = vmatprep.subr.mxu0 %v386
    %956 = vmatpush1.msra.mxu0 %v385
    %957 = vmatprep.subr.mxu0 %v393
    %958 = vmatpush1.msra.mxu0 %v392
    %959 = vmatprep.subr.mxu0 %v400
    %960 = vmatpush1.msra.mxu0 %v399
    %961 = vmatprep.subr.mxu0 %v407
    %962 = vmatpush1.msra.mxu0 %v406
    %963 = vmatprep.subr.mxu0 %v414
    %964 = vmatpush1.msra.mxu0 %v413
    %965 = vmatprep.subr.mxu0 %v421
    %966 = vmatpush1.msra.mxu0 %v420
    %967 = vmatprep.subr.mxu0 %v428
    %968 = vmatpush1.msra.mxu0 %v427
    %969 = vmatprep.subr.mxu0 %v435
    %970 = vmatpush1.msra.mxu0 %v434
    %971 = vmatprep.subr.mxu0 %v442
    %972 = vmatpush1.msra.mxu0 %v441
    %973 = vmatprep.subr.mxu0 %v449
    %974 = vmatpush1.msra.mxu0 %v448
    %975 = vmatprep.subr.mxu0 %v456
    %976 = vmatpush1.msra.mxu0 %v455
    %977 = vmatprep.subr.mxu0 %v463
    %978 = vmatpush1.msra.mxu0 %v462
    %979 = vmatprep.subr.mxu0 %v470
    %980 = vmatpush1.msra.mxu0 %v469
    %981 = vmatprep.subr.mxu0 %v477
    %982 = vmatpush1.msra.mxu0 %v476
    %983 = vmatprep.subr.mxu0 %v484
    %984 = vmatpush1.msra.mxu0 %v483
    %985 = vmatprep.subr.mxu0 %v491
    %986 = vmatpush1.msra.mxu0 %v490
    %987 = vmatprep.subr.mxu0 %v498
    %988 = vmatpush1.msra.mxu0 %v497
    %989 = vmatprep.subr.mxu0 %v505
    %990 = vmatpush1.msra.mxu0 %v504
    %991 = vmatprep.subr.mxu0 %v512
    %992 = vmatpush1.msra.mxu0 %v511
    %993 = vmatprep.subr.mxu0 %v519
    %994 = vmatpush1.msra.mxu0 %v518
    %995 = vmatprep.subr.mxu0 %v526
    %996 = vmatpush1.msra.mxu0 %v525
    %997 = vmatprep.subr.mxu0 %v533
    %998 = vmatpush1.msra.mxu0 %v532
    %999 = vmatprep.subr.mxu0 0.0
    %1000 = vmatpush1.msra.mxu0 0.0
    %1001 = vmatprep.subr.mxu0 0.0
    %1002 = vmatpush1.msra.mxu0 0.0
    %1003 = vmatprep.subr.mxu0 0.0
    %1004 = vmatpush1.msra.mxu0 0.0
    %1005 = vmatprep.subr.mxu0 0.0
    %1006 = vmatpush1.msra.mxu0 0.0
    %1007 = vmatprep.mubr.f32.mxu0 %v539
    %1008 = vmatmul.mubr.f32.gmra.mrb[0].mxu0 %v79
    %v1009 = vpop.f32.mrb[0].mxu0
    %v1010 = vadd.f32 %v885, %v1009
    %v1011 = vpop.f32.mrb[0].mxu0
    %v1012 = vadd.f32 %v887, %v1011
    %1013 = vmatprep.mubr.f32.mxu0 %v542
    %1014 = vmatmul.mubr.f32.gmra.mrb[0].mxu0 %v83
    %v1015 = vpop.f32.mrb[0].mxu0
    %v1016 = vadd.f32 %v891, %v1015
    %v1017 = vpop.f32.mrb[0].mxu0
    %v1018 = vadd.f32 %v893, %v1017
    %1019 = vmatprep.mubr.f32.mxu0 %v545
    %1020 = vmatmul.mubr.f32.gmra.mrb[0].mxu0 %v87
    %v1021 = vpop.f32.mrb[0].mxu0
    %v1022 = vadd.f32 %v897, %v1021
    %v1023 = vpop.f32.mrb[0].mxu0
    %v1024 = vadd.f32 %v899, %v1023
    %1025 = vmatprep.mubr.f32.mxu0 %v548
    %1026 = vmatmul.mubr.f32.gmra.mrb[0].mxu0 %v91
    %v1027 = vpop.f32.mrb[0].mxu0
    %v1028 = vadd.f32 %v903, %v1027
    %v1029 = vpop.f32.mrb[0].mxu0
    %v1030 = vadd.f32 %v905, %v1029
    %1031 = vmatprep.mubr.f32.mxu0 %v551
    %1032 = vmatmul.mubr.f32.gmra.mrb[0].mxu0 %v95
    %v1033 = vpop.f32.mrb[0].mxu0
    %v1034 = vadd.f32 %v909, %v1033
    %v1035 = vpop.f32.mrb[0].mxu0
    %v1036 = vadd.f32 %v911, %v1035
    %1037 = vmatprep.mubr.f32.mxu0 %v554
    %1038 = vmatmul.mubr.f32.gmra.mrb[0].mxu0 %v99
    %v1039 = vpop.f32.mrb[0].mxu0
    %v1040 = vadd.f32 %v915, %v1039
    %v1041 = vpop.f32.mrb[0].mxu0
    %v1042 = vadd.f32 %v917, %v1041
    %1043 = vmatprep.mubr.f32.mxu0 %v557
    %1044 = vmatmul.mubr.f32.gmra.mrb[0].mxu0 %v103
    %v1045 = vpop.f32.mrb[0].mxu0
    %v1046 = vadd.f32 %v921, %v1045
    %v1047 = vpop.f32.mrb[0].mxu0
    %v1048 = vadd.f32 %v923, %v1047
    %1049 = vmatprep.mubr.f32.mxu0 %v560
    %1050 = vmatmul.mubr.f32.gmra.mrb[0].mxu0 %v107
    %v1051 = vpop.f32.mrb[0].mxu0
    %v1052 = vadd.f32 %v927, %v1051
    %v1053 = vpop.f32.mrb[0].mxu0
    %v1054 = vadd.f32 %v929, %v1053
    %1055 = vmatprep.mubr.f32.mxu0 %v563
    %1056 = vmatmul.mubr.f32.gmra.mrb[0].mxu0 %v111
    %v1057 = vpop.f32.mrb[0].mxu0
    %v1058 = vadd.f32 %v933, %v1057
    %v1059 = vpop.f32.mrb[0].mxu0
    %v1060 = vadd.f32 %v935, %v1059
    %1061 = vmatprep.mubr.f32.mxu0 %v566
    %1062 = vmatmul.mubr.f32.gmra.mrb[0].mxu0 %v115
    %v1063 = vpop.f32.mrb[0].mxu0
    %v1064 = vadd.f32 %v939, %v1063
    %v1065 = vpop.f32.mrb[0].mxu0
    %v1066 = vadd.f32 %v941, %v1065
    %1067 = vdwg.mxu0
    %1068 = vmatprep.subr.mxu0 %v122
    %1069 = vmatpush1.msra.mxu0 %v121
    %1070 = vmatprep.subr.mxu0 %v129
    %1071 = vmatpush1.msra.mxu0 %v128
    %1072 = vmatprep.subr.mxu0 %v136
    %1073 = vmatpush1.msra.mxu0 %v135
    %1074 = vmatprep.subr.mxu0 %v143
    %1075 = vmatpush1.msra.mxu0 %v142
    %1076 = vmatprep.subr.mxu0 %v150
    %1077 = vmatpush1.msra.mxu0 %v149
    %1078 = vmatprep.subr.mxu0 %v157
    %1079 = vmatpush1.msra.mxu0 %v156
    %1080 = vmatprep.subr.mxu0 %v164
    %1081 = vmatpush1.msra.mxu0 %v163
    %1082 = vmatprep.subr.mxu0 %v171
    %1083 = vmatpush1.msra.mxu0 %v170
    %1084 = vmatprep.subr.mxu0 %v178
    %1085 = vmatpush1.msra.mxu0 %v177
    %1086 = vmatprep.subr.mxu0 %v185
    %1087 = vmatpush1.msra.mxu0 %v184
    %1088 = vmatprep.subr.mxu0 %v192
    %1089 = vmatpush1.msra.mxu0 %v191
    %1090 = vmatprep.subr.mxu0 %v199
    %1091 = vmatpush1.msra.mxu0 %v198
    %1092 = vmatprep.subr.mxu0 %v206
    %1093 = vmatpush1.msra.mxu0 %v205
    %1094 = vmatprep.subr.mxu0 %v213
    %1095 = vmatpush1.msra.mxu0 %v212
    %1096 = vmatprep.subr.mxu0 %v220
    %1097 = vmatpush1.msra.mxu0 %v219
    %1098 = vmatprep.subr.mxu0 %v227
    %1099 = vmatpush1.msra.mxu0 %v226
    %1100 = vmatprep.subr.mxu0 %v234
    %1101 = vmatpush1.msra.mxu0 %v233
    %1102 = vmatprep.subr.mxu0 %v241
    %1103 = vmatpush1.msra.mxu0 %v240
    %1104 = vmatprep.subr.mxu0 %v248
    %1105 = vmatpush1.msra.mxu0 %v247
    %1106 = vmatprep.subr.mxu0 %v255
    %1107 = vmatpush1.msra.mxu0 %v254
    %1108 = vmatprep.subr.mxu0 %v262
    %1109 = vmatpush1.msra.mxu0 %v261
    %1110 = vmatprep.subr.mxu0 %v269
    %1111 = vmatpush1.msra.mxu0 %v268
    %1112 = vmatprep.subr.mxu0 %v276
    %1113 = vmatpush1.msra.mxu0 %v275
    %1114 = vmatprep.subr.mxu0 %v283
    %1115 = vmatpush1.msra.mxu0 %v282
    %1116 = vmatprep.subr.mxu0 %v290
    %1117 = vmatpush1.msra.mxu0 %v289
    %1118 = vmatprep.subr.mxu0 %v297
    %1119 = vmatpush1.msra.mxu0 %v296
    %1120 = vmatprep.subr.mxu0 %v304
    %1121 = vmatpush1.msra.mxu0 %v303
    %1122 = vmatprep.subr.mxu0 %v311
    %1123 = vmatpush1.msra.mxu0 %v310
    %1124 = vmatprep.subr.mxu0 %v318
    %1125 = vmatpush1.msra.mxu0 %v317
    %1126 = vmatprep.subr.mxu0 %v325
    %1127 = vmatpush1.msra.mxu0 %v324
    %1128 = vmatprep.subr.mxu0 %v332
    %1129 = vmatpush1.msra.mxu0 %v331
    %1130 = vmatprep.subr.mxu0 %v339
    %1131 = vmatpush1.msra.mxu0 %v338
    %1132 = vmatprep.mubr.f32.mxu0 %v78
    %1133 = vmatmul.mubr.f32.gmra.mrb[0].mxu0 %v77
    %v1134 = vpop.f32.mrb[0].mxu0
    %v1135 = vadd.f32 0.0, %v1134
    %v1136 = vpop.f32.mrb[0].mxu0
    %v1137 = vadd.f32 0.0, %v1136
    %1138 = vmatprep.mubr.f32.mxu0 %v82
    %1139 = vmatmul.mubr.f32.gmra.mrb[0].mxu0 %v81
    %v1140 = vpop.f32.mrb[0].mxu0
    %v1141 = vadd.f32 0.0, %v1140
    %v1142 = vpop.f32.mrb[0].mxu0
    %v1143 = vadd.f32 0.0, %v1142
    %1144 = vmatprep.mubr.f32.mxu0 %v86
    %1145 = vmatmul.mubr.f32.gmra.mrb[0].mxu0 %v85
    %v1146 = vpop.f32.mrb[0].mxu0
    %v1147 = vadd.f32 0.0, %v1146
    %v1148 = vpop.f32.mrb[0].mxu0
    %v1149 = vadd.f32 0.0, %v1148
    %1150 = vmatprep.mubr.f32.mxu0 %v90
    %1151 = vmatmul.mubr.f32.gmra.mrb[0].mxu0 %v89
    %v1152 = vpop.f32.mrb[0].mxu0
    %v1153 = vadd.f32 0.0, %v1152
    %v1154 = vpop.f32.mrb[0].mxu0
    %v1155 = vadd.f32 0.0, %v1154
    %1156 = vmatprep.mubr.f32.mxu0 %v94
    %1157 = vmatmul.mubr.f32.gmra.mrb[0].mxu0 %v93
    %v1158 = vpop.f32.mrb[0].mxu0
    %v1159 = vadd.f32 0.0, %v1158
    %v1160 = vpop.f32.mrb[0].mxu0
    %v1161 = vadd.f32 0.0, %v1160
    %1162 = vmatprep.mubr.f32.mxu0 %v98
    %1163 = vmatmul.mubr.f32.gmra.mrb[0].mxu0 %v97
    %v1164 = vpop.f32.mrb[0].mxu0
    %v1165 = vadd.f32 0.0, %v1164
    %v1166 = vpop.f32.mrb[0].mxu0
    %v1167 = vadd.f32 0.0, %v1166
    %1168 = vmatprep.mubr.f32.mxu0 %v102
    %1169 = vmatmul.mubr.f32.gmra.mrb[0].mxu0 %v101
    %v1170 = vpop.f32.mrb[0].mxu0
    %v1171 = vadd.f32 0.0, %v1170
    %v1172 = vpop.f32.mrb[0].mxu0
    %v1173 = vadd.f32 0.0, %v1172
    %1174 = vmatprep.mubr.f32.mxu0 %v106
    %1175 = vmatmul.mubr.f32.gmra.mrb[0].mxu0 %v105
    %v1176 = vpop.f32.mrb[0].mxu0
    %v1177 = vadd.f32 0.0, %v1176
    %v1178 = vpop.f32.mrb[0].mxu0
    %v1179 = vadd.f32 0.0, %v1178
    %1180 = vmatprep.mubr.f32.mxu0 %v110
    %1181 = vmatmul.mubr.f32.gmra.mrb[0].mxu0 %v109
    %v1182 = vpop.f32.mrb[0].mxu0
    %v1183 = vadd.f32 0.0, %v1182
    %v1184 = vpop.f32.mrb[0].mxu0
    %v1185 = vadd.f32 0.0, %v1184
    %1186 = vmatprep.mubr.f32.mxu0 %v114
    %1187 = vmatmul.mubr.f32.gmra.mrb[0].mxu0 %v113
    %v1188 = vpop.f32.mrb[0].mxu0
    %v1189 = vadd.f32 0.0, %v1188
    %v1190 = vpop.f32.mrb[0].mxu0
    %v1191 = vadd.f32 0.0, %v1190
    %1192 = vdwg.mxu0
    %1193 = vmatprep.subr.mxu0 %v346
    %1194 = vmatpush1.msra.mxu0 %v345
    %1195 = vmatprep.subr.mxu0 %v353
    %1196 = vmatpush1.msra.mxu0 %v352
    %1197 = vmatprep.subr.mxu0 %v360
    %1198 = vmatpush1.msra.mxu0 %v359
    %1199 = vmatprep.subr.mxu0 %v367
    %1200 = vmatpush1.msra.mxu0 %v366
    %1201 = vmatprep.subr.mxu0 %v374
    %1202 = vmatpush1.msra.mxu0 %v373
    %1203 = vmatprep.subr.mxu0 %v381
    %1204 = vmatpush1.msra.mxu0 %v380
    %1205 = vmatprep.subr.mxu0 %v388
    %1206 = vmatpush1.msra.mxu0 %v387
    %1207 = vmatprep.subr.mxu0 %v395
    %1208 = vmatpush1.msra.mxu0 %v394
    %1209 = vmatprep.subr.mxu0 %v402
    %1210 = vmatpush1.msra.mxu0 %v401
    %1211 = vmatprep.subr.mxu0 %v409
    %1212 = vmatpush1.msra.mxu0 %v408
    %1213 = vmatprep.subr.mxu0 %v416
    %1214 = vmatpush1.msra.mxu0 %v415
    %1215 = vmatprep.subr.mxu0 %v423
    %1216 = vmatpush1.msra.mxu0 %v422
    %1217 = vmatprep.subr.mxu0 %v430
    %1218 = vmatpush1.msra.mxu0 %v429
    %1219 = vmatprep.subr.mxu0 %v437
    %1220 = vmatpush1.msra.mxu0 %v436
    %1221 = vmatprep.subr.mxu0 %v444
    %1222 = vmatpush1.msra.mxu0 %v443
    %1223 = vmatprep.subr.mxu0 %v451
    %1224 = vmatpush1.msra.mxu0 %v450
    %1225 = vmatprep.subr.mxu0 %v458
    %1226 = vmatpush1.msra.mxu0 %v457
    %1227 = vmatprep.subr.mxu0 %v465
    %1228 = vmatpush1.msra.mxu0 %v464
    %1229 = vmatprep.subr.mxu0 %v472
    %1230 = vmatpush1.msra.mxu0 %v471
    %1231 = vmatprep.subr.mxu0 %v479
    %1232 = vmatpush1.msra.mxu0 %v478
    %1233 = vmatprep.subr.mxu0 %v486
    %1234 = vmatpush1.msra.mxu0 %v485
    %1235 = vmatprep.subr.mxu0 %v493
    %1236 = vmatpush1.msra.mxu0 %v492
    %1237 = vmatprep.subr.mxu0 %v500
    %1238 = vmatpush1.msra.mxu0 %v499
    %1239 = vmatprep.subr.mxu0 %v507
    %1240 = vmatpush1.msra.mxu0 %v506
    %1241 = vmatprep.subr.mxu0 %v514
    %1242 = vmatpush1.msra.mxu0 %v513
    %1243 = vmatprep.subr.mxu0 %v521
    %1244 = vmatpush1.msra.mxu0 %v520
    %1245 = vmatprep.subr.mxu0 %v528
    %1246 = vmatpush1.msra.mxu0 %v527
    %1247 = vmatprep.subr.mxu0 %v535
    %1248 = vmatpush1.msra.mxu0 %v534
    %1249 = vmatprep.subr.mxu0 0.0
    %1250 = vmatpush1.msra.mxu0 0.0
    %1251 = vmatprep.subr.mxu0 0.0
    %1252 = vmatpush1.msra.mxu0 0.0
    %1253 = vmatprep.subr.mxu0 0.0
    %1254 = vmatpush1.msra.mxu0 0.0
    %1255 = vmatprep.subr.mxu0 0.0
    %1256 = vmatpush1.msra.mxu0 0.0
    %1257 = vmatprep.mubr.f32.mxu0 %v539
    %1258 = vmatmul.mubr.f32.gmra.mrb[0].mxu0 %v79
    %v1259 = vpop.f32.mrb[0].mxu0
    %v1260 = vadd.f32 %v1135, %v1259
    %v1261 = vpop.f32.mrb[0].mxu0
    %v1262 = vadd.f32 %v1137, %v1261
    %1263 = vmatprep.mubr.f32.mxu0 %v542
    %1264 = vmatmul.mubr.f32.gmra.mrb[0].mxu0 %v83
    %v1265 = vpop.f32.mrb[0].mxu0
    %v1266 = vadd.f32 %v1141, %v1265
    %v1267 = vpop.f32.mrb[0].mxu0
    %v1268 = vadd.f32 %v1143, %v1267
    %1269 = vmatprep.mubr.f32.mxu0 %v545
    %1270 = vmatmul.mubr.f32.gmra.mrb[0].mxu0 %v87
    %v1271 = vpop.f32.mrb[0].mxu0
    %v1272 = vadd.f32 %v1147, %v1271
    %v1273 = vpop.f32.mrb[0].mxu0
    %v1274 = vadd.f32 %v1149, %v1273
    %1275 = vmatprep.mubr.f32.mxu0 %v548
    %1276 = vmatmul.mubr.f32.gmra.mrb[0].mxu0 %v91
    %v1277 = vpop.f32.mrb[0].mxu0
    %v1278 = vadd.f32 %v1153, %v1277
    %v1279 = vpop.f32.mrb[0].mxu0
    %v1280 = vadd.f32 %v1155, %v1279
    %1281 = vmatprep.mubr.f32.mxu0 %v551
    %1282 = vmatmul.mubr.f32.gmra.mrb[0].mxu0 %v95
    %v1283 = vpop.f32.mrb[0].mxu0
    %v1284 = vadd.f32 %v1159, %v1283
    %v1285 = vpop.f32.mrb[0].mxu0
    %v1286 = vadd.f32 %v1161, %v1285
    %1287 = vmatprep.mubr.f32.mxu0 %v554
    %1288 = vmatmul.mubr.f32.gmra.mrb[0].mxu0 %v99
    %v1289 = vpop.f32.mrb[0].mxu0
    %v1290 = vadd.f32 %v1165, %v1289
    %v1291 = vpop.f32.mrb[0].mxu0
    %v1292 = vadd.f32 %v1167, %v1291
    %1293 = vmatprep.mubr.f32.mxu0 %v557
    %1294 = vmatmul.mubr.f32.gmra.mrb[0].mxu0 %v103
    %v1295 = vpop.f32.mrb[0].mxu0
    %v1296 = vadd.f32 %v1171, %v1295
    %v1297 = vpop.f32.mrb[0].mxu0
    %v1298 = vadd.f32 %v1173, %v1297
    %1299 = vmatprep.mubr.f32.mxu0 %v560
    %1300 = vmatmul.mubr.f32.gmra.mrb[0].mxu0 %v107
    %v1301 = vpop.f32.mrb[0].mxu0
    %v1302 = vadd.f32 %v1177, %v1301
    %v1303 = vpop.f32.mrb[0].mxu0
    %v1304 = vadd.f32 %v1179, %v1303
    %1305 = vmatprep.mubr.f32.mxu0 %v563
    %1306 = vmatmul.mubr.f32.gmra.mrb[0].mxu0 %v111
    %v1307 = vpop.f32.mrb[0].mxu0
    %v1308 = vadd.f32 %v1183, %v1307
    %v1309 = vpop.f32.mrb[0].mxu0
    %v1310 = vadd.f32 %v1185, %v1309
    %1311 = vmatprep.mubr.f32.mxu0 %v566
    %1312 = vmatmul.mubr.f32.gmra.mrb[0].mxu0 %v115
    %v1313 = vpop.f32.mrb[0].mxu0
    %v1314 = vadd.f32 %v1189, %v1313
    %v1315 = vpop.f32.mrb[0].mxu0
    %v1316 = vadd.f32 %v1191, %v1315
    %1317 = vdwg.mxu0
    %1318 = vmatprep.subr.mxu0 0.0
    %1319 = vmatpush1.msra.mxu0 %v123
    %1320 = vmatprep.subr.mxu0 0.0
    %1321 = vmatpush1.msra.mxu0 %v130
    %1322 = vmatprep.subr.mxu0 0.0
    %1323 = vmatpush1.msra.mxu0 %v137
    %1324 = vmatprep.subr.mxu0 0.0
    %1325 = vmatpush1.msra.mxu0 %v144
    %1326 = vmatprep.subr.mxu0 0.0
    %1327 = vmatpush1.msra.mxu0 %v151
    %1328 = vmatprep.subr.mxu0 0.0
    %1329 = vmatpush1.msra.mxu0 %v158
    %1330 = vmatprep.subr.mxu0 0.0
    %1331 = vmatpush1.msra.mxu0 %v165
    %1332 = vmatprep.subr.mxu0 0.0
    %1333 = vmatpush1.msra.mxu0 %v172
    %1334 = vmatprep.subr.mxu0 0.0
    %1335 = vmatpush1.msra.mxu0 %v179
    %1336 = vmatprep.subr.mxu0 0.0
    %1337 = vmatpush1.msra.mxu0 %v186
    %1338 = vmatprep.subr.mxu0 0.0
    %1339 = vmatpush1.msra.mxu0 %v193
    %1340 = vmatprep.subr.mxu0 0.0
    %1341 = vmatpush1.msra.mxu0 %v200
    %1342 = vmatprep.subr.mxu0 0.0
    %1343 = vmatpush1.msra.mxu0 %v207
    %1344 = vmatprep.subr.mxu0 0.0
    %1345 = vmatpush1.msra.mxu0 %v214
    %1346 = vmatprep.subr.mxu0 0.0
    %1347 = vmatpush1.msra.mxu0 %v221
    %1348 = vmatprep.subr.mxu0 0.0
    %1349 = vmatpush1.msra.mxu0 %v228
    %1350 = vmatprep.subr.mxu0 0.0
    %1351 = vmatpush1.msra.mxu0 %v235
    %1352 = vmatprep.subr.mxu0 0.0
    %1353 = vmatpush1.msra.mxu0 %v242
    %1354 = vmatprep.subr.mxu0 0.0
    %1355 = vmatpush1.msra.mxu0 %v249
    %1356 = vmatprep.subr.mxu0 0.0
    %1357 = vmatpush1.msra.mxu0 %v256
    %1358 = vmatprep.subr.mxu0 0.0
    %1359 = vmatpush1.msra.mxu0 %v263
    %1360 = vmatprep.subr.mxu0 0.0
    %1361 = vmatpush1.msra.mxu0 %v270
    %1362 = vmatprep.subr.mxu0 0.0
    %1363 = vmatpush1.msra.mxu0 %v277
    %1364 = vmatprep.subr.mxu0 0.0
    %1365 = vmatpush1.msra.mxu0 %v284
    %1366 = vmatprep.subr.mxu0 0.0
    %1367 = vmatpush1.msra.mxu0 %v291
    %1368 = vmatprep.subr.mxu0 0.0
    %1369 = vmatpush1.msra.mxu0 %v298
    %1370 = vmatprep.subr.mxu0 0.0
    %1371 = vmatpush1.msra.mxu0 %v305
    %1372 = vmatprep.subr.mxu0 0.0
    %1373 = vmatpush1.msra.mxu0 %v312
    %1374 = vmatprep.subr.mxu0 0.0
    %1375 = vmatpush1.msra.mxu0 %v319
    %1376 = vmatprep.subr.mxu0 0.0
    %1377 = vmatpush1.msra.mxu0 %v326
    %1378 = vmatprep.subr.mxu0 0.0
    %1379 = vmatpush1.msra.mxu0 %v333
    %1380 = vmatprep.subr.mxu0 0.0
    %1381 = vmatpush1.msra.mxu0 %v340
    %1382 = vmatprep.mubr.f32.mxu0 %v78
    %1383 = vmatmul.mubr.f32.gmra.mrb[0].mxu0 %v77
    %v1384 = vpop.f32.mrb[0].mxu0
    %v1385 = vadd.f32 0.0, %v1384
    %v1386 = vpop.f32.mrb[0].mxu0
    %1387 = vmatprep.mubr.f32.mxu0 %v82
    %1388 = vmatmul.mubr.f32.gmra.mrb[0].mxu0 %v81
    %v1389 = vpop.f32.mrb[0].mxu0
    %v1390 = vadd.f32 0.0, %v1389
    %v1391 = vpop.f32.mrb[0].mxu0
    %1392 = vmatprep.mubr.f32.mxu0 %v86
    %1393 = vmatmul.mubr.f32.gmra.mrb[0].mxu0 %v85
    %v1394 = vpop.f32.mrb[0].mxu0
    %v1395 = vadd.f32 0.0, %v1394
    %v1396 = vpop.f32.mrb[0].mxu0
    %1397 = vmatprep.mubr.f32.mxu0 %v90
    %1398 = vmatmul.mubr.f32.gmra.mrb[0].mxu0 %v89
    %v1399 = vpop.f32.mrb[0].mxu0
    %v1400 = vadd.f32 0.0, %v1399
    %v1401 = vpop.f32.mrb[0].mxu0
    %1402 = vmatprep.mubr.f32.mxu0 %v94
    %1403 = vmatmul.mubr.f32.gmra.mrb[0].mxu0 %v93
    %v1404 = vpop.f32.mrb[0].mxu0
    %v1405 = vadd.f32 0.0, %v1404
    %v1406 = vpop.f32.mrb[0].mxu0
    %1407 = vmatprep.mubr.f32.mxu0 %v98
    %1408 = vmatmul.mubr.f32.gmra.mrb[0].mxu0 %v97
    %v1409 = vpop.f32.mrb[0].mxu0
    %v1410 = vadd.f32 0.0, %v1409
    %v1411 = vpop.f32.mrb[0].mxu0
    %1412 = vmatprep.mubr.f32.mxu0 %v102
    %1413 = vmatmul.mubr.f32.gmra.mrb[0].mxu0 %v101
    %v1414 = vpop.f32.mrb[0].mxu0
    %v1415 = vadd.f32 0.0, %v1414
    %v1416 = vpop.f32.mrb[0].mxu0
    %1417 = vmatprep.mubr.f32.mxu0 %v106
    %1418 = vmatmul.mubr.f32.gmra.mrb[0].mxu0 %v105
    %v1419 = vpop.f32.mrb[0].mxu0
    %v1420 = vadd.f32 0.0, %v1419
    %v1421 = vpop.f32.mrb[0].mxu0
    %1422 = vmatprep.mubr.f32.mxu0 %v110
    %1423 = vmatmul.mubr.f32.gmra.mrb[0].mxu0 %v109
    %v1424 = vpop.f32.mrb[0].mxu0
    %v1425 = vadd.f32 0.0, %v1424
    %v1426 = vpop.f32.mrb[0].mxu0
    %1427 = vmatprep.mubr.f32.mxu0 %v114
    %1428 = vmatmul.mubr.f32.gmra.mrb[0].mxu0 %v113
    %v1429 = vpop.f32.mrb[0].mxu0
    %v1430 = vadd.f32 0.0, %v1429
    %v1431 = vpop.f32.mrb[0].mxu0
    %1432 = vdwg.mxu0
    %1433 = vmatprep.subr.mxu0 0.0
    %1434 = vmatpush1.msra.mxu0 %v347
    %1435 = vmatprep.subr.mxu0 0.0
    %1436 = vmatpush1.msra.mxu0 %v354
    %1437 = vmatprep.subr.mxu0 0.0
    %1438 = vmatpush1.msra.mxu0 %v361
    %1439 = vmatprep.subr.mxu0 0.0
    %1440 = vmatpush1.msra.mxu0 %v368
    %1441 = vmatprep.subr.mxu0 0.0
    %1442 = vmatpush1.msra.mxu0 %v375
    %1443 = vmatprep.subr.mxu0 0.0
    %1444 = vmatpush1.msra.mxu0 %v382
    %1445 = vmatprep.subr.mxu0 0.0
    %1446 = vmatpush1.msra.mxu0 %v389
    %1447 = vmatprep.subr.mxu0 0.0
    %1448 = vmatpush1.msra.mxu0 %v396
    %1449 = vmatprep.subr.mxu0 0.0
    %1450 = vmatpush1.msra.mxu0 %v403
    %1451 = vmatprep.subr.mxu0 0.0
    %1452 = vmatpush1.msra.mxu0 %v410
    %1453 = vmatprep.subr.mxu0 0.0
    %1454 = vmatpush1.msra.mxu0 %v417
    %1455 = vmatprep.subr.mxu0 0.0
    %1456 = vmatpush1.msra.mxu0 %v424
    %1457 = vmatprep.subr.mxu0 0.0
    %1458 = vmatpush1.msra.mxu0 %v431
    %1459 = vmatprep.subr.mxu0 0.0
    %1460 = vmatpush1.msra.mxu0 %v438
    %1461 = vmatprep.subr.mxu0 0.0
    %1462 = vmatpush1.msra.mxu0 %v445
    %1463 = vmatprep.subr.mxu0 0.0
    %1464 = vmatpush1.msra.mxu0 %v452
    %1465 = vmatprep.subr.mxu0 0.0
    %1466 = vmatpush1.msra.mxu0 %v459
    %1467 = vmatprep.subr.mxu0 0.0
    %1468 = vmatpush1.msra.mxu0 %v466
    %1469 = vmatprep.subr.mxu0 0.0
    %1470 = vmatpush1.msra.mxu0 %v473
    %1471 = vmatprep.subr.mxu0 0.0
    %1472 = vmatpush1.msra.mxu0 %v480
    %1473 = vmatprep.subr.mxu0 0.0
    %1474 = vmatpush1.msra.mxu0 %v487
    %1475 = vmatprep.subr.mxu0 0.0
    %1476 = vmatpush1.msra.mxu0 %v494
    %1477 = vmatprep.subr.mxu0 0.0
    %1478 = vmatpush1.msra.mxu0 %v501
    %1479 = vmatprep.subr.mxu0 0.0
    %1480 = vmatpush1.msra.mxu0 %v508
    %1481 = vmatprep.subr.mxu0 0.0
    %1482 = vmatpush1.msra.mxu0 %v515
    %1483 = vmatprep.subr.mxu0 0.0
    %1484 = vmatpush1.msra.mxu0 %v522
    %1485 = vmatprep.subr.mxu0 0.0
    %1486 = vmatpush1.msra.mxu0 %v529
    %1487 = vmatprep.subr.mxu0 0.0
    %1488 = vmatpush1.msra.mxu0 %v536
    %1489 = vmatprep.subr.mxu0 0.0
    %1490 = vmatpush1.msra.mxu0 0.0
    %1491 = vmatprep.subr.mxu0 0.0
    %1492 = vmatpush1.msra.mxu0 0.0
    %1493 = vmatprep.subr.mxu0 0.0
    %1494 = vmatpush1.msra.mxu0 0.0
    %1495 = vmatprep.subr.mxu0 0.0
    %1496 = vmatpush1.msra.mxu0 0.0
    %1497 = vmatprep.mubr.f32.mxu0 %v539
    %1498 = vmatmul.mubr.f32.gmra.mrb[0].mxu0 %v79
    %v1499 = vpop.f32.mrb[0].mxu0
    %v1500 = vadd.f32 %v1385, %v1499
    %v1501 = vpop.f32.mrb[0].mxu0
    %1502 = vmatprep.mubr.f32.mxu0 %v542
    %1503 = vmatmul.mubr.f32.gmra.mrb[0].mxu0 %v83
    %v1504 = vpop.f32.mrb[0].mxu0
    %v1505 = vadd.f32 %v1390, %v1504
    %v1506 = vpop.f32.mrb[0].mxu0
    %1507 = vmatprep.mubr.f32.mxu0 %v545
    %1508 = vmatmul.mubr.f32.gmra.mrb[0].mxu0 %v87
    %v1509 = vpop.f32.mrb[0].mxu0
    %v1510 = vadd.f32 %v1395, %v1509
    %v1511 = vpop.f32.mrb[0].mxu0
    %1512 = vmatprep.mubr.f32.mxu0 %v548
    %1513 = vmatmul.mubr.f32.gmra.mrb[0].mxu0 %v91
    %v1514 = vpop.f32.mrb[0].mxu0
    %v1515 = vadd.f32 %v1400, %v1514
    %v1516 = vpop.f32.mrb[0].mxu0
    %1517 = vmatprep.mubr.f32.mxu0 %v551
    %1518 = vmatmul.mubr.f32.gmra.mrb[0].mxu0 %v95
    %v1519 = vpop.f32.mrb[0].mxu0
    %v1520 = vadd.f32 %v1405, %v1519
    %v1521 = vpop.f32.mrb[0].mxu0
    %1522 = vmatprep.mubr.f32.mxu0 %v554
    %1523 = vmatmul.mubr.f32.gmra.mrb[0].mxu0 %v99
    %v1524 = vpop.f32.mrb[0].mxu0
    %v1525 = vadd.f32 %v1410, %v1524
    %v1526 = vpop.f32.mrb[0].mxu0
    %1527 = vmatprep.mubr.f32.mxu0 %v557
    %1528 = vmatmul.mubr.f32.gmra.mrb[0].mxu0 %v103
    %v1529 = vpop.f32.mrb[0].mxu0
    %v1530 = vadd.f32 %v1415, %v1529
    %v1531 = vpop.f32.mrb[0].mxu0
    %1532 = vmatprep.mubr.f32.mxu0 %v560
    %1533 = vmatmul.mubr.f32.gmra.mrb[0].mxu0 %v107
    %v1534 = vpop.f32.mrb[0].mxu0
    %v1535 = vadd.f32 %v1420, %v1534
    %v1536 = vpop.f32.mrb[0].mxu0
    %1537 = vmatprep.mubr.f32.mxu0 %v563
    %1538 = vmatmul.mubr.f32.gmra.mrb[0].mxu0 %v111
    %v1539 = vpop.f32.mrb[0].mxu0
    %v1540 = vadd.f32 %v1425, %v1539
    %v1541 = vpop.f32.mrb[0].mxu0
    %1542 = vmatprep.mubr.f32.mxu0 %v566
    %1543 = vmatmul.mubr.f32.gmra.mrb[0].mxu0 %v115
    %v1544 = vpop.f32.mrb[0].mxu0
    %v1545 = vadd.f32 %v1430, %v1544
    %v1546 = vpop.f32.mrb[0].mxu0
    %1547 = vdwg.mxu0
    %1548 = vst [vmem:[#allocation2] sm:$0xff] %v760
    %1549 = vst [vmem:[#allocation2 + $0x8] sm:$0xff] %v762
    %1550 = vst [vmem:[#allocation2 + $0x10] sm:$0xff] %v1010
    %1551 = vst [vmem:[#allocation2 + $0x18] sm:$0xff] %v1012
    %1552 = vst [vmem:[#allocation2 + $0x20] sm:$0xff] %v1260
    %1553 = vst [vmem:[#allocation2 + $0x28] sm:$0xff] %v1262
    %vm1554 = vcmask 130048
    %1555 = vst.msk [vmem:[#allocation2 + $0x30] sm:$0xff] %vm1554, %v1500
    %1556 = vst [vmem:[#allocation2 + $0x38] sm:$0xff] %v766
    %1557 = vst [vmem:[#allocation2 + $0x40] sm:$0xff] %v768
    %1558 = vst [vmem:[#allocation2 + $0x48] sm:$0xff] %v1016
    %1559 = vst [vmem:[#allocation2 + $0x50] sm:$0xff] %v1018
    %1560 = vst [vmem:[#allocation2 + $0x58] sm:$0xff] %v1266
    %1561 = vst [vmem:[#allocation2 + $0x60] sm:$0xff] %v1268
    %1562 = vst.msk [vmem:[#allocation2 + $0x68] sm:$0xff] %vm1554, %v1505
    %1563 = vst [vmem:[#allocation2 + $0x70] sm:$0xff] %v772
    %1564 = vst [vmem:[#allocation2 + $0x78] sm:$0xff] %v774
    %1565 = vst [vmem:[#allocation2 + $0x80] sm:$0xff] %v1022
    %1566 = vst [vmem:[#allocation2 + $0x88] sm:$0xff] %v1024
    %1567 = vst [vmem:[#allocation2 + $0x90] sm:$0xff] %v1272
    %1568 = vst [vmem:[#allocation2 + $0x98] sm:$0xff] %v1274
    %1569 = vst.msk [vmem:[#allocation2 + $0xa0] sm:$0xff] %vm1554, %v1510
    %1570 = vst [vmem:[#allocation2 + $0xa8] sm:$0xff] %v778
    %1571 = vst [vmem:[#allocation2 + $0xb0] sm:$0xff] %v780
    %1572 = vst [vmem:[#allocation2 + $0xb8] sm:$0xff] %v1028
    %1573 = vst [vmem:[#allocation2 + $0xc0] sm:$0xff] %v1030
    %1574 = vst [vmem:[#allocation2 + $0xc8] sm:$0xff] %v1278
    %1575 = vst [vmem:[#allocation2 + $0xd0] sm:$0xff] %v1280
    %1576 = vst.msk [vmem:[#allocation2 + $0xd8] sm:$0xff] %vm1554, %v1515
    %1577 = vst [vmem:[#allocation2 + $0xe0] sm:$0xff] %v784
    %1578 = vst [vmem:[#allocation2 + $0xe8] sm:$0xff] %v786
    %1579 = vst [vmem:[#allocation2 + $0xf0] sm:$0xff] %v1034
    %1580 = vst [vmem:[#allocation2 + $0xf8] sm:$0xff] %v1036
    %1581 = vst [vmem:[#allocation2 + $0x100] sm:$0xff] %v1284
    %1582 = vst [vmem:[#allocation2 + $0x108] sm:$0xff] %v1286
    %1583 = vst.msk [vmem:[#allocation2 + $0x110] sm:$0xff] %vm1554, %v1520
    %1584 = vst [vmem:[#allocation2 + $0x118] sm:$0xff] %v790
    %1585 = vst [vmem:[#allocation2 + $0x120] sm:$0xff] %v792
    %1586 = vst [vmem:[#allocation2 + $0x128] sm:$0xff] %v1040
    %1587 = vst [vmem:[#allocation2 + $0x130] sm:$0xff] %v1042
    %1588 = vst [vmem:[#allocation2 + $0x138] sm:$0xff] %v1290
    %1589 = vst [vmem:[#allocation2 + $0x140] sm:$0xff] %v1292
    %1590 = vst.msk [vmem:[#allocation2 + $0x148] sm:$0xff] %vm1554, %v1525
    %1591 = vst [vmem:[#allocation2 + $0x150] sm:$0xff] %v796
    %1592 = vst [vmem:[#allocation2 + $0x158] sm:$0xff] %v798
    %1593 = vst [vmem:[#allocation2 + $0x160] sm:$0xff] %v1046
    %1594 = vst [vmem:[#allocation2 + $0x168] sm:$0xff] %v1048
    %1595 = vst [vmem:[#allocation2 + $0x170] sm:$0xff] %v1296
    %1596 = vst [vmem:[#allocation2 + $0x178] sm:$0xff] %v1298
    %1597 = vst.msk [vmem:[#allocation2 + $0x180] sm:$0xff] %vm1554, %v1530
    %1598 = vst [vmem:[#allocation2 + $0x188] sm:$0xff] %v802
    %1599 = vst [vmem:[#allocation2 + $0x190] sm:$0xff] %v804
    %1600 = vst [vmem:[#allocation2 + $0x198] sm:$0xff] %v1052
    %1601 = vst [vmem:[#allocation2 + $0x1a0] sm:$0xff] %v1054
    %1602 = vst [vmem:[#allocation2 + $0x1a8] sm:$0xff] %v1302
    %1603 = vst [vmem:[#allocation2 + $0x1b0] sm:$0xff] %v1304
    %1604 = vst.msk [vmem:[#allocation2 + $0x1b8] sm:$0xff] %vm1554, %v1535
    %1605 = vst [vmem:[#allocation2 + $0x1c0] sm:$0xff] %v808
    %1606 = vst [vmem:[#allocation2 + $0x1c8] sm:$0xff] %v810
    %1607 = vst [vmem:[#allocation2 + $0x1d0] sm:$0xff] %v1058
    %1608 = vst [vmem:[#allocation2 + $0x1d8] sm:$0xff] %v1060
    %1609 = vst [vmem:[#allocation2 + $0x1e0] sm:$0xff] %v1308
    %1610 = vst [vmem:[#allocation2 + $0x1e8] sm:$0xff] %v1310
    %1611 = vst.msk [vmem:[#allocation2 + $0x1f0] sm:$0xff] %vm1554, %v1540
    %1612 = vst [vmem:[#allocation2 + $0x1f8] sm:$0xff] %v814
    %1613 = vst [vmem:[#allocation2 + $0x200] sm:$0xff] %v816
    %1614 = vst [vmem:[#allocation2 + $0x208] sm:$0xff] %v1064
    %1615 = vst [vmem:[#allocation2 + $0x210] sm:$0xff] %v1066
    %1616 = vst [vmem:[#allocation2 + $0x218] sm:$0xff] %v1314
    %1617 = vst [vmem:[#allocation2 + $0x220] sm:$0xff] %v1316
    %1618 = vst.msk [vmem:[#allocation2 + $0x228] sm:$0xff] %vm1554, %v1545
    // Predicated region
    $region14: #{tpu_custom_call.1} parent=1 // pred_check
      _
    $region15: #{tpu_custom_call.1} parent=1 // pred_check_branch
      %1620 = sbr.rel (0) target = $region17
    $region16: #{tpu_custom_call.1} parent=1 // pred_region
      %s1622 = ssub.s32 8960, 8960
      %1623 = vsyncadd [#allocation3], %s1622
      %s1624 = sshll.u32 [#allocation2], 4
      %s1625 = int_to_ptr.vmem [resolvable:$true] %s1624
      %1630 = dma.vmem_to_hbm [thread:$0]  %s1625, 8960, %s3, [#allocation3], 896, 896, 56
    $region17: #{tpu_custom_call.1} parent=1 // pred_fallthru
      _
    // Predicated region
    $region18: #{tpu_custom_call.1} parent=1 // pred_check
      _
    $region19: #{tpu_custom_call.1} parent=1 // pred_check_branch
      %1632 = sbr.rel (0) target = $region21
    $region20: #{tpu_custom_call.1} parent=1 // pred_region
      %1633 = dma.done [#allocation3], 8960
    $region21: #{tpu_custom_call.1} parent=1 // pred_fallthru
      _
    %1634 = vsyncpa [#allocation3], 1

</llo_original>
